<compile_context>
chip_gen: v7x
topology: tpu7x:2x2x1
jax: 0.10.0
libtpu: 0.0.40
codegen_flags: <defaults>
</compile_context>

<pallas_src>
import functools

import jax
import jax.numpy as jnp
from jax.experimental import pallas as pl
from jax.experimental.pallas import tpu as pltpu


# ----------------------------- kernel ----------------------------------------


def _apply_activation(x, activation):
    if activation == "relu":
        return jnp.maximum(x, 0.0)
    if activation == "leaky":
        return jnp.where(x > 0, x, 0.1 * x)   # nn.LeakyReLU(negative_slope=0.1)
    if activation == "elu":
        return jnp.where(x > 0, x, jnp.exp(x) - 1.0)
    raise ValueError(f"unsupported activation: {activation}")


def _stack_taps(a, mask_ref, stacked_ref, W, LW):
    """Write the 9 shifted+masked taps of `a` into `stacked_ref` (9*C, LW).

    Tap k = dy*3 + dx, flat spatial offset s = (dy-1)*W + (dx-1).
    shifted[p] = a[p + s]; out-of-image (and cross-image) reads are zeroed by
    the per-image border mask.  The center tap's mask is all ones -> skipped.
    """
    C = a.shape[0]
    for dy in range(3):
        for dx in range(3):
            k = dy * 3 + dx
            s = (dy - 1) * W + (dx - 1)
            if s == 0:
                shifted = a                               # center tap
            else:
                shifted = pltpu.roll(a, shift=(-s) % LW, axis=1) * mask_ref[k]
            stacked_ref[k * C:(k + 1) * C, :] = shifted


def _downblock_kernel(W, LW, activation, pooling, *refs):
    """Fused conv1+act -> conv2+act (-> maxpool 2x2) for one batch tile."""
    if pooling:
        (x_ref, w1_ref, b1_ref, w2_ref, b2_ref, mask_ref, sel_ref,
         bp_ref, pool_ref, tap1_ref, tap2_ref) = refs
    else:
        (x_ref, w1_ref, b1_ref, w2_ref, b2_ref, mask_ref,
         bp_ref, tap1_ref, tap2_ref) = refs

    x = x_ref[0].astype(jnp.float32)                       # (C_in, LW)

    # conv1 + bias + act : single MXU matmul with K = 9*C_in
    _stack_taps(x, mask_ref, tap1_ref, W, LW)
    y1 = jnp.dot(w1_ref[...].astype(jnp.float32), tap1_ref[...],
                 preferred_element_type=jnp.float32)
    y1 = _apply_activation(y1 + b1_ref[...].astype(jnp.float32), activation)

    # conv2 + bias + act : single MXU matmul with K = 9*C_out
    _stack_taps(y1, mask_ref, tap2_ref, W, LW)
    y2 = jnp.dot(w2_ref[...].astype(jnp.float32), tap2_ref[...],
                 preferred_element_type=jnp.float32)
    y2 = _apply_activation(y2 + b2_ref[...].astype(jnp.float32), activation)

    bp_ref[0] = y2.astype(bp_ref.dtype)

    if pooling:
        # 2x2 stride-2 max pool, fused.  Window max via two XLU rolls; the
        # stride-2 selection is a 0/1 matrix on the MXU.  Only even-row /
        # even-col positions are selected, so the roll wrap (across rows /
        # images) never reaches a selected lane.
        m = jnp.maximum(y2, pltpu.roll(y2, shift=LW - 1, axis=1))   # p, p+1
        m = jnp.maximum(m, pltpu.roll(m, shift=LW - W, axis=1))     # +W row
        pooled = jnp.dot(m, sel_ref[...], preferred_element_type=jnp.float32)
        pool_ref[0] = pooled.astype(pool_ref.dtype)


# ----------------------------- wrapper ----------------------------------------


def _pad_axis_to(arr, axis, multiple):
    pad = (-arr.shape[axis]) % multiple
    if pad == 0:
        return arr
    widths = [(0, 0)] * arr.ndim
    widths[axis] = (0, pad)
    return jnp.pad(arr, widths)


def downblock_forward(x, w1, b1, w2, b2, *, pooling=True, activation="relu",
                      normalization=None):
    """Pallas equivalent of DownBlock.forward (dim=2, conv_mode='same').

    Returns (pooled, before_pooling), matching the PyTorch module.
    """
    # TODO(synk): normalization ('batch'/'instance'/'group'), dim=3 and
    # conv_mode='valid' branches of the PyTorch module are not implemented.
    assert normalization is None, "normalization not implemented"
    n, c_in, h, w = x.shape
    c_out = w1.shape[0]
    assert w1.shape == (c_out, c_in, 3, 3)
    assert w2.shape == (c_out, c_out, 3, 3)
    hw = h * w

    # Channel padding to a multiple of 8 (sublane alignment); padded channels
    # are zero end-to-end and sliced off at the end.
    x_p = _pad_axis_to(x, 1, 8)
    w1_p = _pad_axis_to(_pad_axis_to(w1, 1, 8), 0, 8)
    w2_p = _pad_axis_to(_pad_axis_to(w2, 1, 8), 0, 8)
    b1_p = _pad_axis_to(b1, 0, 8)
    b2_p = _pad_axis_to(b2, 0, 8)
    c_in_p = x_p.shape[1]
    c_out_p = w1_p.shape[0]

    # Fold a small batch tile into the lane axis -> lane width b_tile*H*W.
    b_tile = max(1, min(n, max(1, 512 // hw)))
    x_p = _pad_axis_to(x_p, 0, b_tile)
    n_pad = x_p.shape[0]
    n_tiles = n_pad // b_tile
    lw = b_tile * hw

    x_lanes = x_p.reshape(n_tiles, b_tile, c_in_p, hw)
    x_lanes = jnp.transpose(x_lanes, (0, 2, 1, 3)).reshape(n_tiles, c_in_p, lw)

    # Weights flattened k-major: column index = (dy*3 + dx)*C + ci.
    w1_flat = jnp.transpose(w1_p, (0, 2, 3, 1)).reshape(c_out_p, 9 * c_in_p)
    w2_flat = jnp.transpose(w2_p, (0, 2, 3, 1)).reshape(c_out_p, 9 * c_out_p)
    b1_col = b1_p.reshape(c_out_p, 1)
    b2_col = b2_p.reshape(c_out_p, 1)

    # Border-validity masks (implements the zero 'same' pad), tiled per image.
    rows = jnp.arange(h)[:, None]
    cols = jnp.arange(w)[None, :]
    masks = []
    for dy in range(3):
        for dx in range(3):
            m = ((rows + dy - 1 >= 0) & (rows + dy - 1 < h) &
                 (cols + dx - 1 >= 0) & (cols + dx - 1 < w))
            masks.append(m.reshape(hw))
    mask_img = jnp.stack(masks).astype(jnp.float32)           # (9, hw)
    mask = jnp.tile(mask_img, (1, b_tile))[:, None, :]        # (9, 1, lw)

    inputs = [x_lanes, w1_flat, b1_col, w2_flat, b2_col, mask]
    in_specs = [
        pl.BlockSpec((1, c_in_p, lw), lambda b: (b, 0, 0)),
        pl.BlockSpec((c_out_p, 9 * c_in_p), lambda b: (0, 0)),
        pl.BlockSpec((c_out_p, 1), lambda b: (0, 0)),
        pl.BlockSpec((c_out_p, 9 * c_out_p), lambda b: (0, 0)),
        pl.BlockSpec((c_out_p, 1), lambda b: (0, 0)),
        pl.BlockSpec((9, 1, lw), lambda b: (0, 0, 0)),
    ]
    out_shapes = [jax.ShapeDtypeStruct((n_tiles, c_out_p, lw), x.dtype)]
    out_specs = [pl.BlockSpec((1, c_out_p, lw), lambda b: (b, 0, 0))]

    hq = wq = None
    if pooling:
        assert h % 2 == 0 and w % 2 == 0, "maxpool(2,2) needs even spatial dims"
        hq, wq = h // 2, w // 2
        pli = hq * wq
        plw = b_tile * pli
        # 0/1 selection matrix picking even-row/even-col window starts,
        # block-diagonal across the batch tile.
        src = (2 * jnp.arange(hq)[:, None] * w
               + 2 * jnp.arange(wq)[None, :]).reshape(-1)             # (pli,)
        sel_img = (jnp.arange(hw)[:, None] == src[None, :]).astype(jnp.float32)
        sel = jnp.kron(jnp.eye(b_tile, dtype=jnp.float32), sel_img)   # (lw,plw)
        inputs.append(sel)
        in_specs.append(pl.BlockSpec((lw, plw), lambda b: (0, 0)))
        out_shapes.append(jax.ShapeDtypeStruct((n_tiles, c_out_p, plw), x.dtype))
        out_specs.append(pl.BlockSpec((1, c_out_p, plw), lambda b: (b, 0, 0)))

    kernel = functools.partial(_downblock_kernel, w, lw, activation, pooling)
    outs = pl.pallas_call(
        kernel,
        out_shape=tuple(out_shapes),
        grid=(n_tiles,),
        in_specs=in_specs,
        out_specs=tuple(out_specs),
        scratch_shapes=[pltpu.VMEM((9 * c_in_p, lw), jnp.float32),
                        pltpu.VMEM((9 * c_out_p, lw), jnp.float32)],
        compiler_params=pltpu.CompilerParams(
            dimension_semantics=("parallel",),
            # No vmem_limit_bytes override: per-step footprint is << default
            # scoped limits on v5e/v6e/v7x (v7x has only 64 MiB physical VMEM).
        ),
    )(*inputs)

    before = outs[0].reshape(n_tiles, c_out_p, b_tile, h, w)
    before = jnp.transpose(before, (0, 2, 1, 3, 4)).reshape(n_pad, c_out_p, h, w)
    before_pooling = before[:n, :c_out]   # no-op when no padding was applied
    if not pooling:
        return before_pooling, before_pooling

    pooled = outs[1].reshape(n_tiles, c_out_p, b_tile, hq, wq)
    pooled = jnp.transpose(pooled, (0, 2, 1, 3, 4)).reshape(n_pad, c_out_p, hq, wq)
    pooled = pooled[:n, :c_out]
    return pooled, before_pooling


# ----------------------------- reference & demo -------------------------------


def _reference_downblock(x, w1, b1, w2, b2):
    dn = ("NCHW", "OIHW", "NCHW")
    y = jax.lax.conv_general_dilated(
        x, w1, window_strides=(1, 1), padding="SAME", dimension_numbers=dn,
        precision=jax.lax.Precision.HIGHEST)
    y = jnp.maximum(y + b1[None, :, None, None], 0.0)
    y = jax.lax.conv_general_dilated(
        y, w2, window_strides=(1, 1), padding="SAME", dimension_numbers=dn,
        precision=jax.lax.Precision.HIGHEST)
    y = jnp.maximum(y + b2[None, :, None, None], 0.0)
    before = y
    pooled = jax.lax.reduce_window(y, -jnp.inf, jax.lax.max,
                                   (1, 1, 2, 2), (1, 1, 2, 2), "VALID")
    return pooled, before


if __name__ == "__main__":
    key = jax.random.PRNGKey(0)
    kx, kw1, kb1, kw2, kb2 = jax.random.split(key, 5)

    n, c_in, c_out, hh, ww = 2, 4, 8, 16, 16
    x = jax.random.normal(kx, (n, c_in, hh, ww), dtype=jnp.float32)
    w1 = jax.random.normal(kw1, (c_out, c_in, 3, 3), dtype=jnp.float32) * 0.2
    b1 = jax.random.normal(kb1, (c_out,), dtype=jnp.float32) * 0.1
    w2 = jax.random.normal(kw2, (c_out, c_out, 3, 3), dtype=jnp.float32) * 0.2
    b2 = jax.random.normal(kb2, (c_out,), dtype=jnp.float32) * 0.1

    fwd = jax.jit(lambda *a: downblock_forward(*a))
    pooled, before_pooling = jax.block_until_ready(fwd(x, w1, b1, w2, b2))

    ref_pooled, ref_before = _reference_downblock(x, w1, b1, w2, b2)
    assert pooled.shape == (n, c_out, hh // 2, ww // 2)
    assert before_pooling.shape == (n, c_out, hh, ww)
    assert bool(jnp.allclose(before_pooling, ref_before, atol=1e-2, rtol=1e-2))
    assert bool(jnp.allclose(pooled, ref_pooled, atol=1e-2, rtol=1e-2))

    print("KERNEL_OK")
</pallas_src>

<mosaic_0001>
module attributes {stable_mosaic.version = 11 : i64} {
  func.func @_downblock_kernel(%arg0: i32, %arg1: memref<1x8x512xf32, #tpu.memory_space<vmem>>, %arg2: memref<8x72xf32, #tpu.memory_space<vmem>>, %arg3: memref<8x1xf32, #tpu.memory_space<vmem>>, %arg4: memref<8x72xf32, #tpu.memory_space<vmem>>, %arg5: memref<8x1xf32, #tpu.memory_space<vmem>>, %arg6: memref<9x1x512xf32, #tpu.memory_space<vmem>>, %arg7: memref<512x128xf32, #tpu.memory_space<vmem>>, %arg8: memref<1x8x512xf32, #tpu.memory_space<vmem>>, %arg9: memref<1x8x128xf32, #tpu.memory_space<vmem>>, %arg10: memref<72x512xf32, #tpu.memory_space<vmem>>, %arg11: memref<72x512xf32, #tpu.memory_space<vmem>>) attributes {dimension_semantics = [#tpu.dimension_semantics<parallel>], iteration_bounds = array<i64: 1>, scalar_prefetch = 0 : i64, scratch_operands = 2 : i64, tpu.core_type = #tpu.core_type<tc>, window_params = [{transform_indices = @transform_0, window_bounds = array<i64: 1, 8, 512>}, {pipeline_mode = #tpu.pipeline_mode<synchronous>, transform_indices = @transform_1, window_bounds = array<i64: 8, 72>}, {pipeline_mode = #tpu.pipeline_mode<synchronous>, transform_indices = @transform_2, window_bounds = array<i64: 8, 1>}, {pipeline_mode = #tpu.pipeline_mode<synchronous>, transform_indices = @transform_3, window_bounds = array<i64: 8, 72>}, {pipeline_mode = #tpu.pipeline_mode<synchronous>, transform_indices = @transform_4, window_bounds = array<i64: 8, 1>}, {pipeline_mode = #tpu.pipeline_mode<synchronous>, transform_indices = @transform_5, window_bounds = array<i64: 9, 1, 512>}, {pipeline_mode = #tpu.pipeline_mode<synchronous>, transform_indices = @transform_6, window_bounds = array<i64: 512, 128>}, {transform_indices = @transform_7, window_bounds = array<i64: 1, 8, 512>}, {transform_indices = @transform_8, window_bounds = array<i64: 1, 8, 128>}]} {
    %c0 = arith.constant 0 : index
    %c0_0 = arith.constant 0 : index
    %c0_1 = arith.constant 0 : index
    %0 = vector.load %arg1[%c0, %c0_0, %c0_1] : memref<1x8x512xf32, #tpu.memory_space<vmem>>, vector<1x8x512xf32>
    %1 = vector.shape_cast %0 : vector<1x8x512xf32> to vector<8x512xf32>
    %c17_i32 = arith.constant 17 : i32
    %2 = tpu.dynamic_rotate %1 by %c17_i32 dim 1 : vector<8x512xf32>, i32 -> vector<8x512xf32>
    %c0_2 = arith.constant 0 : index
    %c0_3 = arith.constant 0 : index
    %c0_4 = arith.constant 0 : index
    %3 = vector.load %arg6[%c0_2, %c0_3, %c0_4] : memref<9x1x512xf32, #tpu.memory_space<vmem>>, vector<1x1x512xf32>
    %4 = vector.shape_cast %3 : vector<1x1x512xf32> to vector<1x512xf32>
    %5 = vector.broadcast %4 : vector<1x512xf32> to vector<8x512xf32>
    %6 = arith.mulf %2, %5 : vector<8x512xf32>
    %c0_5 = arith.constant 0 : index
    %c0_6 = arith.constant 0 : index
    %7 = vector.load %arg10[%c0_5, %c0_6] : memref<72x512xf32, #tpu.memory_space<vmem>>, vector<8x512xf32>
    tpu.vector_store %arg10[%c0_5, %c0_6], %6 {strides = array<i32>} : memref<72x512xf32, #tpu.memory_space<vmem>>, vector<8x512xf32>,
    %c16_i32 = arith.constant 16 : i32
    %8 = tpu.dynamic_rotate %1 by %c16_i32 dim 1 : vector<8x512xf32>, i32 -> vector<8x512xf32>
    %c1 = arith.constant 1 : index
    %c0_7 = arith.constant 0 : index
    %c0_8 = arith.constant 0 : index
    %9 = vector.load %arg6[%c1, %c0_7, %c0_8] : memref<9x1x512xf32, #tpu.memory_space<vmem>>, vector<1x1x512xf32>
    %10 = vector.shape_cast %9 : vector<1x1x512xf32> to vector<1x512xf32>
    %11 = vector.broadcast %10 : vector<1x512xf32> to vector<8x512xf32>
    %12 = arith.mulf %8, %11 : vector<8x512xf32>
    %c8 = arith.constant 8 : index
    %c0_9 = arith.constant 0 : index
    %13 = vector.load %arg10[%c8, %c0_9] : memref<72x512xf32, #tpu.memory_space<vmem>>, vector<8x512xf32>
    tpu.vector_store %arg10[%c8, %c0_9], %12 {strides = array<i32>} : memref<72x512xf32, #tpu.memory_space<vmem>>, vector<8x512xf32>,
    %c15_i32 = arith.constant 15 : i32
    %14 = tpu.dynamic_rotate %1 by %c15_i32 dim 1 : vector<8x512xf32>, i32 -> vector<8x512xf32>
    %c2 = arith.constant 2 : index
    %c0_10 = arith.constant 0 : index
    %c0_11 = arith.constant 0 : index
    %15 = vector.load %arg6[%c2, %c0_10, %c0_11] : memref<9x1x512xf32, #tpu.memory_space<vmem>>, vector<1x1x512xf32>
    %16 = vector.shape_cast %15 : vector<1x1x512xf32> to vector<1x512xf32>
    %17 = vector.broadcast %16 : vector<1x512xf32> to vector<8x512xf32>
    %18 = arith.mulf %14, %17 : vector<8x512xf32>
    %c16 = arith.constant 16 : index
    %c0_12 = arith.constant 0 : index
    %19 = vector.load %arg10[%c16, %c0_12] : memref<72x512xf32, #tpu.memory_space<vmem>>, vector<8x512xf32>
    tpu.vector_store %arg10[%c16, %c0_12], %18 {strides = array<i32>} : memref<72x512xf32, #tpu.memory_space<vmem>>, vector<8x512xf32>,
    %c1_i32 = arith.constant 1 : i32
    %20 = tpu.dynamic_rotate %1 by %c1_i32 dim 1 : vector<8x512xf32>, i32 -> vector<8x512xf32>
    %c3 = arith.constant 3 : index
    %c0_13 = arith.constant 0 : index
    %c0_14 = arith.constant 0 : index
    %21 = vector.load %arg6[%c3, %c0_13, %c0_14] : memref<9x1x512xf32, #tpu.memory_space<vmem>>, vector<1x1x512xf32>
    %22 = vector.shape_cast %21 : vector<1x1x512xf32> to vector<1x512xf32>
    %23 = vector.broadcast %22 : vector<1x512xf32> to vector<8x512xf32>
    %24 = arith.mulf %20, %23 : vector<8x512xf32>
    %c24 = arith.constant 24 : index
    %c0_15 = arith.constant 0 : index
    %25 = vector.load %arg10[%c24, %c0_15] : memref<72x512xf32, #tpu.memory_space<vmem>>, vector<8x512xf32>
    tpu.vector_store %arg10[%c24, %c0_15], %24 {strides = array<i32>} : memref<72x512xf32, #tpu.memory_space<vmem>>, vector<8x512xf32>,
    %c32 = arith.constant 32 : index
    %c0_16 = arith.constant 0 : index
    %26 = vector.load %arg10[%c32, %c0_16] : memref<72x512xf32, #tpu.memory_space<vmem>>, vector<8x512xf32>
    tpu.vector_store %arg10[%c32, %c0_16], %1 {strides = array<i32>} : memref<72x512xf32, #tpu.memory_space<vmem>>, vector<8x512xf32>,
    %c511_i32 = arith.constant 511 : i32
    %27 = tpu.dynamic_rotate %1 by %c511_i32 dim 1 : vector<8x512xf32>, i32 -> vector<8x512xf32>
    %c5 = arith.constant 5 : index
    %c0_17 = arith.constant 0 : index
    %c0_18 = arith.constant 0 : index
    %28 = vector.load %arg6[%c5, %c0_17, %c0_18] : memref<9x1x512xf32, #tpu.memory_space<vmem>>, vector<1x1x512xf32>
    %29 = vector.shape_cast %28 : vector<1x1x512xf32> to vector<1x512xf32>
    %30 = vector.broadcast %29 : vector<1x512xf32> to vector<8x512xf32>
    %31 = arith.mulf %27, %30 : vector<8x512xf32>
    %c40 = arith.constant 40 : index
    %c0_19 = arith.constant 0 : index
    %32 = vector.load %arg10[%c40, %c0_19] : memref<72x512xf32, #tpu.memory_space<vmem>>, vector<8x512xf32>
    tpu.vector_store %arg10[%c40, %c0_19], %31 {strides = array<i32>} : memref<72x512xf32, #tpu.memory_space<vmem>>, vector<8x512xf32>,
    %c497_i32 = arith.constant 497 : i32
    %33 = tpu.dynamic_rotate %1 by %c497_i32 dim 1 : vector<8x512xf32>, i32 -> vector<8x512xf32>
    %c6 = arith.constant 6 : index
    %c0_20 = arith.constant 0 : index
    %c0_21 = arith.constant 0 : index
    %34 = vector.load %arg6[%c6, %c0_20, %c0_21] : memref<9x1x512xf32, #tpu.memory_space<vmem>>, vector<1x1x512xf32>
    %35 = vector.shape_cast %34 : vector<1x1x512xf32> to vector<1x512xf32>
    %36 = vector.broadcast %35 : vector<1x512xf32> to vector<8x512xf32>
    %37 = arith.mulf %33, %36 : vector<8x512xf32>
    %c48 = arith.constant 48 : index
    %c0_22 = arith.constant 0 : index
    %38 = vector.load %arg10[%c48, %c0_22] : memref<72x512xf32, #tpu.memory_space<vmem>>, vector<8x512xf32>
    tpu.vector_store %arg10[%c48, %c0_22], %37 {strides = array<i32>} : memref<72x512xf32, #tpu.memory_space<vmem>>, vector<8x512xf32>,
    %c496_i32 = arith.constant 496 : i32
    %39 = tpu.dynamic_rotate %1 by %c496_i32 dim 1 : vector<8x512xf32>, i32 -> vector<8x512xf32>
    %c7 = arith.constant 7 : index
    %c0_23 = arith.constant 0 : index
    %c0_24 = arith.constant 0 : index
    %40 = vector.load %arg6[%c7, %c0_23, %c0_24] : memref<9x1x512xf32, #tpu.memory_space<vmem>>, vector<1x1x512xf32>
    %41 = vector.shape_cast %40 : vector<1x1x512xf32> to vector<1x512xf32>
    %42 = vector.broadcast %41 : vector<1x512xf32> to vector<8x512xf32>
    %43 = arith.mulf %39, %42 : vector<8x512xf32>
    %c56 = arith.constant 56 : index
    %c0_25 = arith.constant 0 : index
    %44 = vector.load %arg10[%c56, %c0_25] : memref<72x512xf32, #tpu.memory_space<vmem>>, vector<8x512xf32>
    tpu.vector_store %arg10[%c56, %c0_25], %43 {strides = array<i32>} : memref<72x512xf32, #tpu.memory_space<vmem>>, vector<8x512xf32>,
    %c495_i32 = arith.constant 495 : i32
    %45 = tpu.dynamic_rotate %1 by %c495_i32 dim 1 : vector<8x512xf32>, i32 -> vector<8x512xf32>
    %c8_26 = arith.constant 8 : index
    %c0_27 = arith.constant 0 : index
    %c0_28 = arith.constant 0 : index
    %46 = vector.load %arg6[%c8_26, %c0_27, %c0_28] : memref<9x1x512xf32, #tpu.memory_space<vmem>>, vector<1x1x512xf32>
    %47 = vector.shape_cast %46 : vector<1x1x512xf32> to vector<1x512xf32>
    %48 = vector.broadcast %47 : vector<1x512xf32> to vector<8x512xf32>
    %49 = arith.mulf %45, %48 : vector<8x512xf32>
    %c64 = arith.constant 64 : index
    %c0_29 = arith.constant 0 : index
    %50 = vector.load %arg10[%c64, %c0_29] : memref<72x512xf32, #tpu.memory_space<vmem>>, vector<8x512xf32>
    tpu.vector_store %arg10[%c64, %c0_29], %49 {strides = array<i32>} : memref<72x512xf32, #tpu.memory_space<vmem>>, vector<8x512xf32>,
    %c0_30 = arith.constant 0 : index
    %c0_31 = arith.constant 0 : index
    %51 = vector.load %arg2[%c0_30, %c0_31] : memref<8x72xf32, #tpu.memory_space<vmem>>, vector<8x72xf32>
    %c0_32 = arith.constant 0 : index
    %c0_33 = arith.constant 0 : index
    %52 = vector.load %arg10[%c0_32, %c0_33] : memref<72x512xf32, #tpu.memory_space<vmem>>, vector<72x512xf32>
    %cst = arith.constant dense<0.000000e+00> : vector<8x512xf32>
    %53 = tpu.matmul %51, %52, %cst {dimension_numbers = #tpu.dot_dimension_numbers<[1], [0], [0], [1], [0, 0, 1, 1], [], []>} : vector<8x72xf32>, vector<72x512xf32>, vector<8x512xf32> -> vector<8x512xf32>
    %c0_34 = arith.constant 0 : index
    %c0_35 = arith.constant 0 : index
    %54 = vector.load %arg3[%c0_34, %c0_35] : memref<8x1xf32, #tpu.memory_space<vmem>>, vector<8x1xf32>
    %55 = vector.broadcast %54 : vector<8x1xf32> to vector<8x512xf32>
    %56 = arith.addf %53, %55 : vector<8x512xf32>
    %cst_36 = arith.constant 0.000000e+00 : f32
    %57 = vector.broadcast %cst_36 : f32 to vector<8x512xf32>
    %58 = arith.maximumf %56, %57 : vector<8x512xf32>
    %c17_i32_37 = arith.constant 17 : i32
    %59 = tpu.dynamic_rotate %58 by %c17_i32_37 dim 1 : vector<8x512xf32>, i32 -> vector<8x512xf32>
    %c0_38 = arith.constant 0 : index
    %c0_39 = arith.constant 0 : index
    %c0_40 = arith.constant 0 : index
    %60 = vector.load %arg6[%c0_38, %c0_39, %c0_40] : memref<9x1x512xf32, #tpu.memory_space<vmem>>, vector<1x1x512xf32>
    %61 = vector.shape_cast %60 : vector<1x1x512xf32> to vector<1x512xf32>
    %62 = vector.broadcast %61 : vector<1x512xf32> to vector<8x512xf32>
    %63 = arith.mulf %59, %62 : vector<8x512xf32>
    %c0_41 = arith.constant 0 : index
    %c0_42 = arith.constant 0 : index
    %64 = vector.load %arg11[%c0_41, %c0_42] : memref<72x512xf32, #tpu.memory_space<vmem>>, vector<8x512xf32>
    tpu.vector_store %arg11[%c0_41, %c0_42], %63 {strides = array<i32>} : memref<72x512xf32, #tpu.memory_space<vmem>>, vector<8x512xf32>,
    %c16_i32_43 = arith.constant 16 : i32
    %65 = tpu.dynamic_rotate %58 by %c16_i32_43 dim 1 : vector<8x512xf32>, i32 -> vector<8x512xf32>
    %c1_44 = arith.constant 1 : index
    %c0_45 = arith.constant 0 : index
    %c0_46 = arith.constant 0 : index
    %66 = vector.load %arg6[%c1_44, %c0_45, %c0_46] : memref<9x1x512xf32, #tpu.memory_space<vmem>>, vector<1x1x512xf32>
    %67 = vector.shape_cast %66 : vector<1x1x512xf32> to vector<1x512xf32>
    %68 = vector.broadcast %67 : vector<1x512xf32> to vector<8x512xf32>
    %69 = arith.mulf %65, %68 : vector<8x512xf32>
    %c8_47 = arith.constant 8 : index
    %c0_48 = arith.constant 0 : index
    %70 = vector.load %arg11[%c8_47, %c0_48] : memref<72x512xf32, #tpu.memory_space<vmem>>, vector<8x512xf32>
    tpu.vector_store %arg11[%c8_47, %c0_48], %69 {strides = array<i32>} : memref<72x512xf32, #tpu.memory_space<vmem>>, vector<8x512xf32>,
    %c15_i32_49 = arith.constant 15 : i32
    %71 = tpu.dynamic_rotate %58 by %c15_i32_49 dim 1 : vector<8x512xf32>, i32 -> vector<8x512xf32>
    %c2_50 = arith.constant 2 : index
    %c0_51 = arith.constant 0 : index
    %c0_52 = arith.constant 0 : index
    %72 = vector.load %arg6[%c2_50, %c0_51, %c0_52] : memref<9x1x512xf32, #tpu.memory_space<vmem>>, vector<1x1x512xf32>
    %73 = vector.shape_cast %72 : vector<1x1x512xf32> to vector<1x512xf32>
    %74 = vector.broadcast %73 : vector<1x512xf32> to vector<8x512xf32>
    %75 = arith.mulf %71, %74 : vector<8x512xf32>
    %c16_53 = arith.constant 16 : index
    %c0_54 = arith.constant 0 : index
    %76 = vector.load %arg11[%c16_53, %c0_54] : memref<72x512xf32, #tpu.memory_space<vmem>>, vector<8x512xf32>
    tpu.vector_store %arg11[%c16_53, %c0_54], %75 {strides = array<i32>} : memref<72x512xf32, #tpu.memory_space<vmem>>, vector<8x512xf32>,
    %c1_i32_55 = arith.constant 1 : i32
    %77 = tpu.dynamic_rotate %58 by %c1_i32_55 dim 1 : vector<8x512xf32>, i32 -> vector<8x512xf32>
    %c3_56 = arith.constant 3 : index
    %c0_57 = arith.constant 0 : index
    %c0_58 = arith.constant 0 : index
    %78 = vector.load %arg6[%c3_56, %c0_57, %c0_58] : memref<9x1x512xf32, #tpu.memory_space<vmem>>, vector<1x1x512xf32>
    %79 = vector.shape_cast %78 : vector<1x1x512xf32> to vector<1x512xf32>
    %80 = vector.broadcast %79 : vector<1x512xf32> to vector<8x512xf32>
    %81 = arith.mulf %77, %80 : vector<8x512xf32>
    %c24_59 = arith.constant 24 : index
    %c0_60 = arith.constant 0 : index
    %82 = vector.load %arg11[%c24_59, %c0_60] : memref<72x512xf32, #tpu.memory_space<vmem>>, vector<8x512xf32>
    tpu.vector_store %arg11[%c24_59, %c0_60], %81 {strides = array<i32>} : memref<72x512xf32, #tpu.memory_space<vmem>>, vector<8x512xf32>,
    %c32_61 = arith.constant 32 : index
    %c0_62 = arith.constant 0 : index
    %83 = vector.load %arg11[%c32_61, %c0_62] : memref<72x512xf32, #tpu.memory_space<vmem>>, vector<8x512xf32>
    tpu.vector_store %arg11[%c32_61, %c0_62], %58 {strides = array<i32>} : memref<72x512xf32, #tpu.memory_space<vmem>>, vector<8x512xf32>,
    %c511_i32_63 = arith.constant 511 : i32
    %84 = tpu.dynamic_rotate %58 by %c511_i32_63 dim 1 : vector<8x512xf32>, i32 -> vector<8x512xf32>
    %c5_64 = arith.constant 5 : index
    %c0_65 = arith.constant 0 : index
    %c0_66 = arith.constant 0 : index
    %85 = vector.load %arg6[%c5_64, %c0_65, %c0_66] : memref<9x1x512xf32, #tpu.memory_space<vmem>>, vector<1x1x512xf32>
    %86 = vector.shape_cast %85 : vector<1x1x512xf32> to vector<1x512xf32>
    %87 = vector.broadcast %86 : vector<1x512xf32> to vector<8x512xf32>
    %88 = arith.mulf %84, %87 : vector<8x512xf32>
    %c40_67 = arith.constant 40 : index
    %c0_68 = arith.constant 0 : index
    %89 = vector.load %arg11[%c40_67, %c0_68] : memref<72x512xf32, #tpu.memory_space<vmem>>, vector<8x512xf32>
    tpu.vector_store %arg11[%c40_67, %c0_68], %88 {strides = array<i32>} : memref<72x512xf32, #tpu.memory_space<vmem>>, vector<8x512xf32>,
    %c497_i32_69 = arith.constant 497 : i32
    %90 = tpu.dynamic_rotate %58 by %c497_i32_69 dim 1 : vector<8x512xf32>, i32 -> vector<8x512xf32>
    %c6_70 = arith.constant 6 : index
    %c0_71 = arith.constant 0 : index
    %c0_72 = arith.constant 0 : index
    %91 = vector.load %arg6[%c6_70, %c0_71, %c0_72] : memref<9x1x512xf32, #tpu.memory_space<vmem>>, vector<1x1x512xf32>
    %92 = vector.shape_cast %91 : vector<1x1x512xf32> to vector<1x512xf32>
    %93 = vector.broadcast %92 : vector<1x512xf32> to vector<8x512xf32>
    %94 = arith.mulf %90, %93 : vector<8x512xf32>
    %c48_73 = arith.constant 48 : index
    %c0_74 = arith.constant 0 : index
    %95 = vector.load %arg11[%c48_73, %c0_74] : memref<72x512xf32, #tpu.memory_space<vmem>>, vector<8x512xf32>
    tpu.vector_store %arg11[%c48_73, %c0_74], %94 {strides = array<i32>} : memref<72x512xf32, #tpu.memory_space<vmem>>, vector<8x512xf32>,
    %c496_i32_75 = arith.constant 496 : i32
    %96 = tpu.dynamic_rotate %58 by %c496_i32_75 dim 1 : vector<8x512xf32>, i32 -> vector<8x512xf32>
    %c7_76 = arith.constant 7 : index
    %c0_77 = arith.constant 0 : index
    %c0_78 = arith.constant 0 : index
    %97 = vector.load %arg6[%c7_76, %c0_77, %c0_78] : memref<9x1x512xf32, #tpu.memory_space<vmem>>, vector<1x1x512xf32>
    %98 = vector.shape_cast %97 : vector<1x1x512xf32> to vector<1x512xf32>
    %99 = vector.broadcast %98 : vector<1x512xf32> to vector<8x512xf32>
    %100 = arith.mulf %96, %99 : vector<8x512xf32>
    %c56_79 = arith.constant 56 : index
    %c0_80 = arith.constant 0 : index
    %101 = vector.load %arg11[%c56_79, %c0_80] : memref<72x512xf32, #tpu.memory_space<vmem>>, vector<8x512xf32>
    tpu.vector_store %arg11[%c56_79, %c0_80], %100 {strides = array<i32>} : memref<72x512xf32, #tpu.memory_space<vmem>>, vector<8x512xf32>,
    %c495_i32_81 = arith.constant 495 : i32
    %102 = tpu.dynamic_rotate %58 by %c495_i32_81 dim 1 : vector<8x512xf32>, i32 -> vector<8x512xf32>
    %c8_82 = arith.constant 8 : index
    %c0_83 = arith.constant 0 : index
    %c0_84 = arith.constant 0 : index
    %103 = vector.load %arg6[%c8_82, %c0_83, %c0_84] : memref<9x1x512xf32, #tpu.memory_space<vmem>>, vector<1x1x512xf32>
    %104 = vector.shape_cast %103 : vector<1x1x512xf32> to vector<1x512xf32>
    %105 = vector.broadcast %104 : vector<1x512xf32> to vector<8x512xf32>
    %106 = arith.mulf %102, %105 : vector<8x512xf32>
    %c64_85 = arith.constant 64 : index
    %c0_86 = arith.constant 0 : index
    %107 = vector.load %arg11[%c64_85, %c0_86] : memref<72x512xf32, #tpu.memory_space<vmem>>, vector<8x512xf32>
    tpu.vector_store %arg11[%c64_85, %c0_86], %106 {strides = array<i32>} : memref<72x512xf32, #tpu.memory_space<vmem>>, vector<8x512xf32>,
    %c0_87 = arith.constant 0 : index
    %c0_88 = arith.constant 0 : index
    %108 = vector.load %arg4[%c0_87, %c0_88] : memref<8x72xf32, #tpu.memory_space<vmem>>, vector<8x72xf32>
    %c0_89 = arith.constant 0 : index
    %c0_90 = arith.constant 0 : index
    %109 = vector.load %arg11[%c0_89, %c0_90] : memref<72x512xf32, #tpu.memory_space<vmem>>, vector<72x512xf32>
    %cst_91 = arith.constant dense<0.000000e+00> : vector<8x512xf32>
    %110 = tpu.matmul %108, %109, %cst_91 {dimension_numbers = #tpu.dot_dimension_numbers<[1], [0], [0], [1], [0, 0, 1, 1], [], []>} : vector<8x72xf32>, vector<72x512xf32>, vector<8x512xf32> -> vector<8x512xf32>
    %c0_92 = arith.constant 0 : index
    %c0_93 = arith.constant 0 : index
    %111 = vector.load %arg5[%c0_92, %c0_93] : memref<8x1xf32, #tpu.memory_space<vmem>>, vector<8x1xf32>
    %112 = vector.broadcast %111 : vector<8x1xf32> to vector<8x512xf32>
    %113 = arith.addf %110, %112 : vector<8x512xf32>
    %cst_94 = arith.constant 0.000000e+00 : f32
    %114 = vector.broadcast %cst_94 : f32 to vector<8x512xf32>
    %115 = arith.maximumf %113, %114 : vector<8x512xf32>
    %c0_95 = arith.constant 0 : index
    %c0_96 = arith.constant 0 : index
    %c0_97 = arith.constant 0 : index
    %116 = vector.load %arg8[%c0_95, %c0_96, %c0_97] : memref<1x8x512xf32, #tpu.memory_space<vmem>>, vector<1x8x512xf32>
    %117 = vector.shape_cast %116 : vector<1x8x512xf32> to vector<8x512xf32>
    %118 = vector.shape_cast %115 : vector<8x512xf32> to vector<1x8x512xf32>
    tpu.vector_store %arg8[%c0_95, %c0_96, %c0_97], %118 {strides = array<i32>} : memref<1x8x512xf32, #tpu.memory_space<vmem>>, vector<1x8x512xf32>,
    %c511_i32_98 = arith.constant 511 : i32
    %119 = tpu.dynamic_rotate %115 by %c511_i32_98 dim 1 : vector<8x512xf32>, i32 -> vector<8x512xf32>
    %120 = arith.maximumf %115, %119 : vector<8x512xf32>
    %c496_i32_99 = arith.constant 496 : i32
    %121 = tpu.dynamic_rotate %120 by %c496_i32_99 dim 1 : vector<8x512xf32>, i32 -> vector<8x512xf32>
    %122 = arith.maximumf %120, %121 : vector<8x512xf32>
    %c0_100 = arith.constant 0 : index
    %c0_101 = arith.constant 0 : index
    %123 = vector.load %arg7[%c0_100, %c0_101] : memref<512x128xf32, #tpu.memory_space<vmem>>, vector<512x128xf32>
    %cst_102 = arith.constant dense<0.000000e+00> : vector<8x128xf32>
    %124 = tpu.matmul %122, %123, %cst_102 {dimension_numbers = #tpu.dot_dimension_numbers<[1], [0], [0], [1], [0, 0, 1, 1], [], []>} : vector<8x512xf32>, vector<512x128xf32>, vector<8x128xf32> -> vector<8x128xf32>
    %c0_103 = arith.constant 0 : index
    %c0_104 = arith.constant 0 : index
    %c0_105 = arith.constant 0 : index
    %125 = vector.load %arg9[%c0_103, %c0_104, %c0_105] : memref<1x8x128xf32, #tpu.memory_space<vmem>>, vector<1x8x128xf32>
    %126 = vector.shape_cast %125 : vector<1x8x128xf32> to vector<8x128xf32>
    %127 = vector.shape_cast %124 : vector<8x128xf32> to vector<1x8x128xf32>
    tpu.vector_store %arg9[%c0_103, %c0_104, %c0_105], %127 {strides = array<i32>} : memref<1x8x128xf32, #tpu.memory_space<vmem>>, vector<1x8x128xf32>,
    return
  }
  func.func @transform_0(%arg0: i32) -> (i32, i32, i32) {
    %c0_i32 = arith.constant 0 : i32
    %c0_i32_0 = arith.constant 0 : i32
    %c0_i32_1 = arith.constant 0 : i32
    return %arg0, %c0_i32, %c0_i32_0 : i32, i32, i32
  }
  func.func @transform_1(%arg0: i32) -> (i32, i32) {
    %c0_i32 = arith.constant 0 : i32
    %c0_i32_0 = arith.constant 0 : i32
    %c0_i32_1 = arith.constant 0 : i32
    return %c0_i32, %c0_i32_0 : i32, i32
  }
  func.func @transform_2(%arg0: i32) -> (i32, i32) {
    %c0_i32 = arith.constant 0 : i32
    %c0_i32_0 = arith.constant 0 : i32
    %c0_i32_1 = arith.constant 0 : i32
    return %c0_i32, %c0_i32_0 : i32, i32
  }
  func.func @transform_3(%arg0: i32) -> (i32, i32) {
    %c0_i32 = arith.constant 0 : i32
    %c0_i32_0 = arith.constant 0 : i32
    %c0_i32_1 = arith.constant 0 : i32
    return %c0_i32, %c0_i32_0 : i32, i32
  }
  func.func @transform_4(%arg0: i32) -> (i32, i32) {
    %c0_i32 = arith.constant 0 : i32
    %c0_i32_0 = arith.constant 0 : i32
    %c0_i32_1 = arith.constant 0 : i32
    return %c0_i32, %c0_i32_0 : i32, i32
  }
  func.func @transform_5(%arg0: i32) -> (i32, i32, i32) {
    %c0_i32 = arith.constant 0 : i32
    %c0_i32_0 = arith.constant 0 : i32
    %c0_i32_1 = arith.constant 0 : i32
    %c0_i32_2 = arith.constant 0 : i32
    return %c0_i32, %c0_i32_0, %c0_i32_1 : i32, i32, i32
  }
  func.func @transform_6(%arg0: i32) -> (i32, i32) {
    %c0_i32 = arith.constant 0 : i32
    %c0_i32_0 = arith.constant 0 : i32
    %c0_i32_1 = arith.constant 0 : i32
    return %c0_i32, %c0_i32_0 : i32, i32
  }
  func.func @transform_7(%arg0: i32) -> (i32, i32, i32) {
    %c0_i32 = arith.constant 0 : i32
    %c0_i32_0 = arith.constant 0 : i32
    %c0_i32_1 = arith.constant 0 : i32
    return %arg0, %c0_i32, %c0_i32_0 : i32, i32, i32
  }
  func.func @transform_8(%arg0: i32) -> (i32, i32, i32) {
    %c0_i32 = arith.constant 0 : i32
    %c0_i32_0 = arith.constant 0 : i32
    %c0_i32_1 = arith.constant 0 : i32
    return %arg0, %c0_i32, %c0_i32_0 : i32, i32, i32
  }
}

</mosaic_0001>

<llo_original>
// kernel: _lambda_.1
$region0: #{_lambda_.1}
  #allocation0 [shape = 'u32[]', space=smem, size = 0x4, offset = 0x4, fixed_abs, tag = 'smem constant byte address 0x4 - core index']
  #allocation1 [shape = 'u32[144,128]{1,0:T(1,128)}', space=vmem, size = 0x12000, scoped, tag = 'internal scratch']
  #allocation2 [shape = 'f32[72,512]{1,0:T(8,128)}', space=vmem, size = 0x24000, scoped, tag = 'scratch operand']
  #allocation3 [shape = 'f32[72,512]{1,0:T(8,128)}', space=vmem, size = 0x24000, scoped, tag = 'scratch operand']
  %s0 = inlined_call_operand.vmem [shape: f32[1,8,512], index: 0, kind: input, shape index: {}]
  %s1 = inlined_call_operand.vmem [shape: f32[8,72], index: 1, kind: input, shape index: {}]
  %s2 = inlined_call_operand.vmem [shape: f32[8,1], index: 2, kind: input, shape index: {}]
  %s3 = inlined_call_operand.vmem [shape: f32[8,72], index: 3, kind: input, shape index: {}]
  %s4 = inlined_call_operand.vmem [shape: f32[8,1], index: 4, kind: input, shape index: {}]
  %s5 = inlined_call_operand.vmem [shape: f32[9,1,512], index: 5, kind: input, shape index: {}]
  %s6 = inlined_call_operand.vmem [shape: f32[512,128], index: 6, kind: input, shape index: {}]
  %s7 = inlined_call_operand.vmem [shape: f32[1,8,512], index: 7, kind: output, shape index: {0}]
  %s8 = inlined_call_operand.vmem [shape: f32[1,8,128], index: 8, kind: output, shape index: {1}]
  %9 = xla_tuple %s7, %s8
  %s10 = sld [smem:[#allocation0]]
  $region46: #{_lambda_.1} parent=0
    _
  %s12 = ssub.s32 1, %s10
  %s13 = scalar_select 0, %s12, %s10
  // Predicated region
  $region2: #{_lambda_.1} parent=0 // pred_check
    _
  $region3: #{_lambda_.1} parent=0 // pred_check_branch
    %15 = sbr.rel (0) target = $region5
  $region4: #{_lambda_.1} parent=0 // pred_region
    _
  $region5: #{_lambda_.1} parent=0 // pred_fallthru
    _
  // Predicated region
  $region6: #{_lambda_.1} parent=0 // pred_check
    _
  $region7: #{_lambda_.1} parent=0 // pred_check_branch
    %17 = sbr.rel (0) target = $region9
  $region8: #{_lambda_.1} parent=0 // pred_region
    _
  $region9: #{_lambda_.1} parent=0 // pred_fallthru
    _
  // Predicated region
  $region10: #{_lambda_.1} parent=0 // pred_check
    _
  $region11: #{_lambda_.1} parent=0 // pred_check_branch
    %19 = sbr.rel (0) target = $region13
  $region12: #{_lambda_.1} parent=0 // pred_region
    _
  $region13: #{_lambda_.1} parent=0 // pred_fallthru
    _
  // Predicated region
  $region14: #{_lambda_.1} parent=0 // pred_check
    _
  $region15: #{_lambda_.1} parent=0 // pred_check_branch
    %21 = sbr.rel (0) target = $region17
  $region16: #{_lambda_.1} parent=0 // pred_region
    _
  $region17: #{_lambda_.1} parent=0 // pred_fallthru
    _
  // Predicated region
  $region18: #{_lambda_.1} parent=0 // pred_check
    _
  $region19: #{_lambda_.1} parent=0 // pred_check_branch
    %23 = sbr.rel (0) target = $region21
  $region20: #{_lambda_.1} parent=0 // pred_region
    _
  $region21: #{_lambda_.1} parent=0 // pred_fallthru
    _
  // Predicated region
  $region22: #{_lambda_.1} parent=0 // pred_check
    _
  $region23: #{_lambda_.1} parent=0 // pred_check_branch
    %25 = sbr.rel (0) target = $region25
  $region24: #{_lambda_.1} parent=0 // pred_region
    _
  $region25: #{_lambda_.1} parent=0 // pred_fallthru
    _
  // Predicated region
  $region26: #{_lambda_.1} parent=0 // pred_check
    _
  $region27: #{_lambda_.1} parent=0 // pred_check_branch
    %27 = sbr.rel (0) target = $region29
  $region28: #{_lambda_.1} parent=0 // pred_region
    _
  $region29: #{_lambda_.1} parent=0 // pred_fallthru
    _
  %v28 = vld [vmem:[%s0] sm:$0xff]
  %v29 = vld [vmem:[%s0 + $0x8] sm:$0xff]
  %v30 = vld [vmem:[%s0 + $0x10] sm:$0xff]
  %v31 = vld [vmem:[%s0 + $0x18] sm:$0xff]
  %32 = vrot.lane.b32.xlu0 %v28, 17
  %v33 = vpop.permute.xlu0 %32
  %34 = vrot.lane.b32.xlu0 %v29, 17
  %v35 = vpop.permute.xlu0 %34
  %36 = vrot.lane.b32.xlu0 %v30, 17
  %v37 = vpop.permute.xlu0 %36
  %38 = vrot.lane.b32.xlu0 %v31, 17
  %v39 = vpop.permute.xlu0 %38
  %v40 = vlaneseq
  %v41 = vand.u32 %v40, 127
  %vm42 = vcmp.lt.s32.totalorder %v41, 17
  %v43 = vsel %vm42, %v37, %v39
  %v44 = vsel %vm42, %v35, %v37
  %v45 = vsel %vm42, %v33, %v35
  %v46 = vsel %vm42, %v39, %v33
  %v47 = vld [vmem:[%s5] sm:$0xf]
  %v49 = vlaneseq
  %v50 = vshrl.u32 %v49, 7
  %v51 = vsub.s32 0, %v50
  %v52 = vrot.slane %v47, %v51
  %v53 = vlaneseq
  %v54 = vshrl.u32 %v53, 7
  %v55 = vsub.s32 1, %v54
  %v56 = vrot.slane %v47, %v55
  %v57 = vlaneseq
  %v58 = vshrl.u32 %v57, 7
  %v59 = vsub.s32 2, %v58
  %v60 = vrot.slane %v47, %v59
  %v61 = vlaneseq
  %v62 = vshrl.u32 %v61, 7
  %v63 = vsub.s32 3, %v62
  %v64 = vrot.slane %v47, %v63
  %v69 = vmul.f32 %v46, %v52
  %v70 = vmul.f32 %v45, %v56
  %v71 = vmul.f32 %v44, %v60
  %v72 = vmul.f32 %v43, %v64
  %73 = vst [vmem:[#allocation2] sm:$0xff] %v69
  %74 = vst [vmem:[#allocation2 + $0x8] sm:$0xff] %v70
  %75 = vst [vmem:[#allocation2 + $0x10] sm:$0xff] %v71
  %76 = vst [vmem:[#allocation2 + $0x18] sm:$0xff] %v72
  %77 = vrot.lane.b32.xlu0 %v28, 16
  %v78 = vpop.permute.xlu0 %77
  %79 = vrot.lane.b32.xlu0 %v29, 16
  %v80 = vpop.permute.xlu0 %79
  %81 = vrot.lane.b32.xlu0 %v30, 16
  %v82 = vpop.permute.xlu0 %81
  %83 = vrot.lane.b32.xlu0 %v31, 16
  %v84 = vpop.permute.xlu0 %83
  %vm85 = vcmp.lt.s32.totalorder %v41, 16
  %v86 = vsel %vm85, %v82, %v84
  %v87 = vsel %vm85, %v80, %v82
  %v88 = vsel %vm85, %v78, %v80
  %v89 = vsel %vm85, %v84, %v78
  %s90 = scalar_lea.vmem %s5, 4
  %v91 = vld [vmem:[%s90] sm:$0xf]
  %v93 = vlaneseq
  %v94 = vshrl.u32 %v93, 7
  %v95 = vsub.s32 0, %v94
  %v96 = vrot.slane %v91, %v95
  %v97 = vlaneseq
  %v98 = vshrl.u32 %v97, 7
  %v99 = vsub.s32 1, %v98
  %v100 = vrot.slane %v91, %v99
  %v101 = vlaneseq
  %v102 = vshrl.u32 %v101, 7
  %v103 = vsub.s32 2, %v102
  %v104 = vrot.slane %v91, %v103
  %v105 = vlaneseq
  %v106 = vshrl.u32 %v105, 7
  %v107 = vsub.s32 3, %v106
  %v108 = vrot.slane %v91, %v107
  %v113 = vmul.f32 %v89, %v96
  %v114 = vmul.f32 %v88, %v100
  %v115 = vmul.f32 %v87, %v104
  %v116 = vmul.f32 %v86, %v108
  %117 = vst [vmem:[#allocation2 + $0x20] sm:$0xff] %v113
  %118 = vst [vmem:[#allocation2 + $0x28] sm:$0xff] %v114
  %119 = vst [vmem:[#allocation2 + $0x30] sm:$0xff] %v115
  %120 = vst [vmem:[#allocation2 + $0x38] sm:$0xff] %v116
  %121 = vrot.lane.b32.xlu0 %v28, 15
  %v122 = vpop.permute.xlu0 %121
  %123 = vrot.lane.b32.xlu0 %v29, 15
  %v124 = vpop.permute.xlu0 %123
  %125 = vrot.lane.b32.xlu0 %v30, 15
  %v126 = vpop.permute.xlu0 %125
  %127 = vrot.lane.b32.xlu0 %v31, 15
  %v128 = vpop.permute.xlu0 %127
  %vm129 = vcmp.lt.s32.totalorder %v41, 15
  %v130 = vsel %vm129, %v126, %v128
  %v131 = vsel %vm129, %v124, %v126
  %v132 = vsel %vm129, %v122, %v124
  %v133 = vsel %vm129, %v128, %v122
  %s134 = scalar_lea.vmem %s5, 8
  %v135 = vld [vmem:[%s134] sm:$0xf]
  %v137 = vlaneseq
  %v138 = vshrl.u32 %v137, 7
  %v139 = vsub.s32 0, %v138
  %v140 = vrot.slane %v135, %v139
  %v141 = vlaneseq
  %v142 = vshrl.u32 %v141, 7
  %v143 = vsub.s32 1, %v142
  %v144 = vrot.slane %v135, %v143
  %v145 = vlaneseq
  %v146 = vshrl.u32 %v145, 7
  %v147 = vsub.s32 2, %v146
  %v148 = vrot.slane %v135, %v147
  %v149 = vlaneseq
  %v150 = vshrl.u32 %v149, 7
  %v151 = vsub.s32 3, %v150
  %v152 = vrot.slane %v135, %v151
  %v157 = vmul.f32 %v133, %v140
  %v158 = vmul.f32 %v132, %v144
  %v159 = vmul.f32 %v131, %v148
  %v160 = vmul.f32 %v130, %v152
  %161 = vst [vmem:[#allocation2 + $0x40] sm:$0xff] %v157
  %162 = vst [vmem:[#allocation2 + $0x48] sm:$0xff] %v158
  %163 = vst [vmem:[#allocation2 + $0x50] sm:$0xff] %v159
  %164 = vst [vmem:[#allocation2 + $0x58] sm:$0xff] %v160
  %165 = vrot.lane.b32.xlu0 %v28, 1
  %v166 = vpop.permute.xlu0 %165
  %167 = vrot.lane.b32.xlu0 %v29, 1
  %v168 = vpop.permute.xlu0 %167
  %169 = vrot.lane.b32.xlu0 %v30, 1
  %v170 = vpop.permute.xlu0 %169
  %171 = vrot.lane.b32.xlu0 %v31, 1
  %v172 = vpop.permute.xlu0 %171
  %vm173 = vcmp.lt.s32.totalorder %v41, 1
  %v174 = vsel %vm173, %v170, %v172
  %v175 = vsel %vm173, %v168, %v170
  %v176 = vsel %vm173, %v166, %v168
  %v177 = vsel %vm173, %v172, %v166
  %s178 = scalar_lea.vmem %s5, 12
  %v179 = vld [vmem:[%s178] sm:$0xf]
  %v181 = vlaneseq
  %v182 = vshrl.u32 %v181, 7
  %v183 = vsub.s32 0, %v182
  %v184 = vrot.slane %v179, %v183
  %v185 = vlaneseq
  %v186 = vshrl.u32 %v185, 7
  %v187 = vsub.s32 1, %v186
  %v188 = vrot.slane %v179, %v187
  %v189 = vlaneseq
  %v190 = vshrl.u32 %v189, 7
  %v191 = vsub.s32 2, %v190
  %v192 = vrot.slane %v179, %v191
  %v193 = vlaneseq
  %v194 = vshrl.u32 %v193, 7
  %v195 = vsub.s32 3, %v194
  %v196 = vrot.slane %v179, %v195
  %v201 = vmul.f32 %v177, %v184
  %v202 = vmul.f32 %v176, %v188
  %v203 = vmul.f32 %v175, %v192
  %v204 = vmul.f32 %v174, %v196
  %205 = vst [vmem:[#allocation2 + $0x60] sm:$0xff] %v201
  %206 = vst [vmem:[#allocation2 + $0x68] sm:$0xff] %v202
  %207 = vst [vmem:[#allocation2 + $0x70] sm:$0xff] %v203
  %208 = vst [vmem:[#allocation2 + $0x78] sm:$0xff] %v204
  %209 = vst [vmem:[#allocation2 + $0x80] sm:$0xff] %v28
  %210 = vst [vmem:[#allocation2 + $0x88] sm:$0xff] %v29
  %211 = vst [vmem:[#allocation2 + $0x90] sm:$0xff] %v30
  %212 = vst [vmem:[#allocation2 + $0x98] sm:$0xff] %v31
  %213 = vrot.lane.b32.xlu0 %v28, 127
  %v214 = vpop.permute.xlu0 %213
  %215 = vrot.lane.b32.xlu0 %v29, 127
  %v216 = vpop.permute.xlu0 %215
  %217 = vrot.lane.b32.xlu0 %v30, 127
  %v218 = vpop.permute.xlu0 %217
  %219 = vrot.lane.b32.xlu0 %v31, 127
  %v220 = vpop.permute.xlu0 %219
  %vm221 = vcmp.lt.s32.totalorder %v41, 127
  %v222 = vsel %vm221, %v218, %v220
  %v223 = vsel %vm221, %v216, %v218
  %v224 = vsel %vm221, %v214, %v216
  %v225 = vsel %vm221, %v220, %v214
  %s226 = scalar_lea.vmem %s5, 20
  %v227 = vld [vmem:[%s226] sm:$0xf]
  %v229 = vlaneseq
  %v230 = vshrl.u32 %v229, 7
  %v231 = vsub.s32 0, %v230
  %v232 = vrot.slane %v227, %v231
  %v233 = vlaneseq
  %v234 = vshrl.u32 %v233, 7
  %v235 = vsub.s32 1, %v234
  %v236 = vrot.slane %v227, %v235
  %v237 = vlaneseq
  %v238 = vshrl.u32 %v237, 7
  %v239 = vsub.s32 2, %v238
  %v240 = vrot.slane %v227, %v239
  %v241 = vlaneseq
  %v242 = vshrl.u32 %v241, 7
  %v243 = vsub.s32 3, %v242
  %v244 = vrot.slane %v227, %v243
  %v249 = vmul.f32 %v224, %v232
  %v250 = vmul.f32 %v223, %v236
  %v251 = vmul.f32 %v222, %v240
  %v252 = vmul.f32 %v225, %v244
  %253 = vst [vmem:[#allocation2 + $0xa0] sm:$0xff] %v249
  %254 = vst [vmem:[#allocation2 + $0xa8] sm:$0xff] %v250
  %255 = vst [vmem:[#allocation2 + $0xb0] sm:$0xff] %v251
  %256 = vst [vmem:[#allocation2 + $0xb8] sm:$0xff] %v252
  %257 = vrot.lane.b32.xlu0 %v28, 113
  %v258 = vpop.permute.xlu0 %257
  %259 = vrot.lane.b32.xlu0 %v29, 113
  %v260 = vpop.permute.xlu0 %259
  %261 = vrot.lane.b32.xlu0 %v30, 113
  %v262 = vpop.permute.xlu0 %261
  %263 = vrot.lane.b32.xlu0 %v31, 113
  %v264 = vpop.permute.xlu0 %263
  %vm265 = vcmp.lt.s32.totalorder %v41, 113
  %v266 = vsel %vm265, %v262, %v264
  %v267 = vsel %vm265, %v260, %v262
  %v268 = vsel %vm265, %v258, %v260
  %v269 = vsel %vm265, %v264, %v258
  %s270 = scalar_lea.vmem %s5, 24
  %v271 = vld [vmem:[%s270] sm:$0xf]
  %v273 = vlaneseq
  %v274 = vshrl.u32 %v273, 7
  %v275 = vsub.s32 0, %v274
  %v276 = vrot.slane %v271, %v275
  %v277 = vlaneseq
  %v278 = vshrl.u32 %v277, 7
  %v279 = vsub.s32 1, %v278
  %v280 = vrot.slane %v271, %v279
  %v281 = vlaneseq
  %v282 = vshrl.u32 %v281, 7
  %v283 = vsub.s32 2, %v282
  %v284 = vrot.slane %v271, %v283
  %v285 = vlaneseq
  %v286 = vshrl.u32 %v285, 7
  %v287 = vsub.s32 3, %v286
  %v288 = vrot.slane %v271, %v287
  %v293 = vmul.f32 %v268, %v276
  %v294 = vmul.f32 %v267, %v280
  %v295 = vmul.f32 %v266, %v284
  %v296 = vmul.f32 %v269, %v288
  %297 = vst [vmem:[#allocation2 + $0xc0] sm:$0xff] %v293
  %298 = vst [vmem:[#allocation2 + $0xc8] sm:$0xff] %v294
  %299 = vst [vmem:[#allocation2 + $0xd0] sm:$0xff] %v295
  %300 = vst [vmem:[#allocation2 + $0xd8] sm:$0xff] %v296
  %301 = vrot.lane.b32.xlu0 %v28, 112
  %v302 = vpop.permute.xlu0 %301
  %303 = vrot.lane.b32.xlu0 %v29, 112
  %v304 = vpop.permute.xlu0 %303
  %305 = vrot.lane.b32.xlu0 %v30, 112
  %v306 = vpop.permute.xlu0 %305
  %307 = vrot.lane.b32.xlu0 %v31, 112
  %v308 = vpop.permute.xlu0 %307
  %vm309 = vcmp.lt.s32.totalorder %v41, 112
  %v310 = vsel %vm309, %v306, %v308
  %v311 = vsel %vm309, %v304, %v306
  %v312 = vsel %vm309, %v302, %v304
  %v313 = vsel %vm309, %v308, %v302
  %s314 = scalar_lea.vmem %s5, 28
  %v315 = vld [vmem:[%s314] sm:$0xf]
  %v317 = vlaneseq
  %v318 = vshrl.u32 %v317, 7
  %v319 = vsub.s32 0, %v318
  %v320 = vrot.slane %v315, %v319
  %v321 = vlaneseq
  %v322 = vshrl.u32 %v321, 7
  %v323 = vsub.s32 1, %v322
  %v324 = vrot.slane %v315, %v323
  %v325 = vlaneseq
  %v326 = vshrl.u32 %v325, 7
  %v327 = vsub.s32 2, %v326
  %v328 = vrot.slane %v315, %v327
  %v329 = vlaneseq
  %v330 = vshrl.u32 %v329, 7
  %v331 = vsub.s32 3, %v330
  %v332 = vrot.slane %v315, %v331
  %v337 = vmul.f32 %v312, %v320
  %v338 = vmul.f32 %v311, %v324
  %v339 = vmul.f32 %v310, %v328
  %v340 = vmul.f32 %v313, %v332
  %341 = vst [vmem:[#allocation2 + $0xe0] sm:$0xff] %v337
  %342 = vst [vmem:[#allocation2 + $0xe8] sm:$0xff] %v338
  %343 = vst [vmem:[#allocation2 + $0xf0] sm:$0xff] %v339
  %344 = vst [vmem:[#allocation2 + $0xf8] sm:$0xff] %v340
  %345 = vrot.lane.b32.xlu0 %v28, 111
  %v346 = vpop.permute.xlu0 %345
  %347 = vrot.lane.b32.xlu0 %v29, 111
  %v348 = vpop.permute.xlu0 %347
  %349 = vrot.lane.b32.xlu0 %v30, 111
  %v350 = vpop.permute.xlu0 %349
  %351 = vrot.lane.b32.xlu0 %v31, 111
  %v352 = vpop.permute.xlu0 %351
  %vm353 = vcmp.lt.s32.totalorder %v41, 111
  %v354 = vsel %vm353, %v350, %v352
  %v355 = vsel %vm353, %v348, %v350
  %v356 = vsel %vm353, %v346, %v348
  %v357 = vsel %vm353, %v352, %v346
  %s358 = scalar_lea.vmem %s5, 32
  %v359 = vld [vmem:[%s358] sm:$0xf]
  %v361 = vlaneseq
  %v362 = vshrl.u32 %v361, 7
  %v363 = vsub.s32 0, %v362
  %v364 = vrot.slane %v359, %v363
  %v365 = vlaneseq
  %v366 = vshrl.u32 %v365, 7
  %v367 = vsub.s32 1, %v366
  %v368 = vrot.slane %v359, %v367
  %v369 = vlaneseq
  %v370 = vshrl.u32 %v369, 7
  %v371 = vsub.s32 2, %v370
  %v372 = vrot.slane %v359, %v371
  %v373 = vlaneseq
  %v374 = vshrl.u32 %v373, 7
  %v375 = vsub.s32 3, %v374
  %v376 = vrot.slane %v359, %v375
  %v381 = vmul.f32 %v356, %v364
  %v382 = vmul.f32 %v355, %v368
  %v383 = vmul.f32 %v354, %v372
  %v384 = vmul.f32 %v357, %v376
  %385 = vst [vmem:[#allocation2 + $0x100] sm:$0xff] %v381
  %386 = vst [vmem:[#allocation2 + $0x108] sm:$0xff] %v382
  %387 = vst [vmem:[#allocation2 + $0x110] sm:$0xff] %v383
  %388 = vst [vmem:[#allocation2 + $0x118] sm:$0xff] %v384
  %v389 = vld [vmem:[%s1] sm:$0xff]
  %v390 = vld [vmem:[#allocation2] sm:$0xff]
  %v391 = vld [vmem:[#allocation2 + $0x8] sm:$0xff]
  %v392 = vld [vmem:[#allocation2 + $0x10] sm:$0xff]
  %v393 = vld [vmem:[#allocation2 + $0x18] sm:$0xff]
  %v394 = vld [vmem:[#allocation2 + $0x20] sm:$0xff]
  %v395 = vld [vmem:[#allocation2 + $0x28] sm:$0xff]
  %v396 = vld [vmem:[#allocation2 + $0x30] sm:$0xff]
  %v397 = vld [vmem:[#allocation2 + $0x38] sm:$0xff]
  %v398 = vld [vmem:[#allocation2 + $0x40] sm:$0xff]
  %v399 = vld [vmem:[#allocation2 + $0x48] sm:$0xff]
  %v400 = vld [vmem:[#allocation2 + $0x50] sm:$0xff]
  %v401 = vld [vmem:[#allocation2 + $0x58] sm:$0xff]
  %v402 = vld [vmem:[#allocation2 + $0x60] sm:$0xff]
  %v403 = vld [vmem:[#allocation2 + $0x68] sm:$0xff]
  %v404 = vld [vmem:[#allocation2 + $0x70] sm:$0xff]
  %v405 = vld [vmem:[#allocation2 + $0x78] sm:$0xff]
  %v406 = vld [vmem:[#allocation2 + $0x80] sm:$0xff]
  %v407 = vld [vmem:[#allocation2 + $0x88] sm:$0xff]
  %v408 = vld [vmem:[#allocation2 + $0x90] sm:$0xff]
  %v409 = vld [vmem:[#allocation2 + $0x98] sm:$0xff]
  %v410 = vld [vmem:[#allocation2 + $0xa0] sm:$0xff]
  %v411 = vld [vmem:[#allocation2 + $0xa8] sm:$0xff]
  %v412 = vld [vmem:[#allocation2 + $0xb0] sm:$0xff]
  %v413 = vld [vmem:[#allocation2 + $0xb8] sm:$0xff]
  %v414 = vld [vmem:[#allocation2 + $0xc0] sm:$0xff]
  %v415 = vld [vmem:[#allocation2 + $0xc8] sm:$0xff]
  %v416 = vld [vmem:[#allocation2 + $0xd0] sm:$0xff]
  %v417 = vld [vmem:[#allocation2 + $0xd8] sm:$0xff]
  %v418 = vld [vmem:[#allocation2 + $0xe0] sm:$0xff]
  %v419 = vld [vmem:[#allocation2 + $0xe8] sm:$0xff]
  %v420 = vld [vmem:[#allocation2 + $0xf0] sm:$0xff]
  %v421 = vld [vmem:[#allocation2 + $0xf8] sm:$0xff]
  %v422 = vld [vmem:[#allocation2 + $0x100] sm:$0xff]
  %v423 = vld [vmem:[#allocation2 + $0x108] sm:$0xff]
  %v424 = vld [vmem:[#allocation2 + $0x110] sm:$0xff]
  %v425 = vld [vmem:[#allocation2 + $0x118] sm:$0xff]
  %v426 = vld [vmem:[%s2] sm:$0xff]
  %428 = vset.pattern.permute.xlu0 0
  %429 = vperm.xlu0 %428, %v426
  %v430 = vpop.permute.xlu0 %429
  %vm432 = vcmask 588800
  %v434 = vsel %vm432, %v389, 0
  %436 = vmatprep.subr.mxu0 %v391
  %437 = vmatpush1.msra.mxu0 %v390
  %438 = vmatprep.subr.mxu0 %v395
  %439 = vmatpush1.msra.mxu0 %v394
  %440 = vmatprep.subr.mxu0 %v399
  %441 = vmatpush1.msra.mxu0 %v398
  %442 = vmatprep.subr.mxu0 %v403
  %443 = vmatpush1.msra.mxu0 %v402
  %444 = vmatprep.subr.mxu0 %v407
  %445 = vmatpush1.msra.mxu0 %v406
  %446 = vmatprep.subr.mxu0 %v411
  %447 = vmatpush1.msra.mxu0 %v410
  %448 = vmatprep.subr.mxu0 %v415
  %449 = vmatpush1.msra.mxu0 %v414
  %450 = vmatprep.subr.mxu0 %v419
  %451 = vmatpush1.msra.mxu0 %v418
  %452 = vmatprep.subr.mxu0 %v423
  %453 = vmatpush1.msra.mxu0 %v422
  %454 = vmatprep.subr.mxu0 0.0
  %455 = vmatpush1.msra.mxu0 0.0
  %456 = vmatprep.subr.mxu0 0.0
  %457 = vmatpush1.msra.mxu0 0.0
  %458 = vmatprep.subr.mxu0 0.0
  %459 = vmatpush1.msra.mxu0 0.0
  %460 = vmatprep.subr.mxu0 0.0
  %461 = vmatpush1.msra.mxu0 0.0
  %462 = vmatprep.subr.mxu0 0.0
  %463 = vmatpush1.msra.mxu0 0.0
  %464 = vmatprep.subr.mxu0 0.0
  %465 = vmatpush1.msra.mxu0 0.0
  %466 = vmatprep.subr.mxu0 0.0
  %467 = vmatpush1.msra.mxu0 0.0
  %468 = vmatprep.subr.mxu0 0.0
  %469 = vmatpush1.msra.mxu0 0.0
  %470 = vmatprep.subr.mxu0 0.0
  %471 = vmatpush1.msra.mxu0 0.0
  %472 = vmatprep.subr.mxu0 0.0
  %473 = vmatpush1.msra.mxu0 0.0
  %474 = vmatprep.subr.mxu0 0.0
  %475 = vmatpush1.msra.mxu0 0.0
  %476 = vmatprep.subr.mxu0 0.0
  %477 = vmatpush1.msra.mxu0 0.0
  %478 = vmatprep.subr.mxu0 0.0
  %479 = vmatpush1.msra.mxu0 0.0
  %480 = vmatprep.subr.mxu0 0.0
  %481 = vmatpush1.msra.mxu0 0.0
  %482 = vmatprep.subr.mxu0 0.0
  %483 = vmatpush1.msra.mxu0 0.0
  %484 = vmatprep.subr.mxu0 0.0
  %485 = vmatpush1.msra.mxu0 0.0
  %486 = vmatprep.subr.mxu0 0.0
  %487 = vmatpush1.msra.mxu0 0.0
  %488 = vmatprep.subr.mxu0 0.0
  %489 = vmatpush1.msra.mxu0 0.0
  %490 = vmatprep.subr.mxu0 0.0
  %491 = vmatpush1.msra.mxu0 0.0
  %492 = vmatprep.subr.mxu0 0.0
  %493 = vmatpush1.msra.mxu0 0.0
  %494 = vmatprep.subr.mxu0 0.0
  %495 = vmatpush1.msra.mxu0 0.0
  %496 = vmatprep.subr.mxu0 0.0
  %497 = vmatpush1.msra.mxu0 0.0
  %498 = vmatprep.subr.mxu0 0.0
  %499 = vmatpush1.msra.mxu0 0.0
  %500 = vmatprep.mubr.f32.mxu0 0.0
  %501 = vmatmul.mubr.f32.gmra.mrb[0].mxu0 %v434
  %v502 = vpop.f32.mrb[0].mxu0
  %v503 = vadd.f32 %v430, %v502
  %v504 = vpop.f32.mrb[0].mxu0
  %v505 = vadd.f32 %v430, %v504
  %506 = vdwg.mxu0
  %507 = vmatprep.subr.mxu0 %v393
  %508 = vmatpush1.msra.mxu0 %v392
  %509 = vmatprep.subr.mxu0 %v397
  %510 = vmatpush1.msra.mxu0 %v396
  %511 = vmatprep.subr.mxu0 %v401
  %512 = vmatpush1.msra.mxu0 %v400
  %513 = vmatprep.subr.mxu0 %v405
  %514 = vmatpush1.msra.mxu0 %v404
  %515 = vmatprep.subr.mxu0 %v409
  %516 = vmatpush1.msra.mxu0 %v408
  %517 = vmatprep.subr.mxu0 %v413
  %518 = vmatpush1.msra.mxu0 %v412
  %519 = vmatprep.subr.mxu0 %v417
  %520 = vmatpush1.msra.mxu0 %v416
  %521 = vmatprep.subr.mxu0 %v421
  %522 = vmatpush1.msra.mxu0 %v420
  %523 = vmatprep.subr.mxu0 %v425
  %524 = vmatpush1.msra.mxu0 %v424
  %525 = vmatprep.subr.mxu0 0.0
  %526 = vmatpush1.msra.mxu0 0.0
  %527 = vmatprep.subr.mxu0 0.0
  %528 = vmatpush1.msra.mxu0 0.0
  %529 = vmatprep.subr.mxu0 0.0
  %530 = vmatpush1.msra.mxu0 0.0
  %531 = vmatprep.subr.mxu0 0.0
  %532 = vmatpush1.msra.mxu0 0.0
  %533 = vmatprep.subr.mxu0 0.0
  %534 = vmatpush1.msra.mxu0 0.0
  %535 = vmatprep.subr.mxu0 0.0
  %536 = vmatpush1.msra.mxu0 0.0
  %537 = vmatprep.subr.mxu0 0.0
  %538 = vmatpush1.msra.mxu0 0.0
  %539 = vmatprep.subr.mxu0 0.0
  %540 = vmatpush1.msra.mxu0 0.0
  %541 = vmatprep.subr.mxu0 0.0
  %542 = vmatpush1.msra.mxu0 0.0
  %543 = vmatprep.subr.mxu0 0.0
  %544 = vmatpush1.msra.mxu0 0.0
  %545 = vmatprep.subr.mxu0 0.0
  %546 = vmatpush1.msra.mxu0 0.0
  %547 = vmatprep.subr.mxu0 0.0
  %548 = vmatpush1.msra.mxu0 0.0
  %549 = vmatprep.subr.mxu0 0.0
  %550 = vmatpush1.msra.mxu0 0.0
  %551 = vmatprep.subr.mxu0 0.0
  %552 = vmatpush1.msra.mxu0 0.0
  %553 = vmatprep.subr.mxu0 0.0
  %554 = vmatpush1.msra.mxu0 0.0
  %555 = vmatprep.subr.mxu0 0.0
  %556 = vmatpush1.msra.mxu0 0.0
  %557 = vmatprep.subr.mxu0 0.0
  %558 = vmatpush1.msra.mxu0 0.0
  %559 = vmatprep.subr.mxu0 0.0
  %560 = vmatpush1.msra.mxu0 0.0
  %561 = vmatprep.subr.mxu0 0.0
  %562 = vmatpush1.msra.mxu0 0.0
  %563 = vmatprep.subr.mxu0 0.0
  %564 = vmatpush1.msra.mxu0 0.0
  %565 = vmatprep.subr.mxu0 0.0
  %566 = vmatpush1.msra.mxu0 0.0
  %567 = vmatprep.subr.mxu0 0.0
  %568 = vmatpush1.msra.mxu0 0.0
  %569 = vmatprep.subr.mxu0 0.0
  %570 = vmatpush1.msra.mxu0 0.0
  %571 = vmatprep.mubr.f32.mxu0 0.0
  %572 = vmatmul.mubr.f32.gmra.mrb[0].mxu0 %v434
  %v573 = vpop.f32.mrb[0].mxu0
  %v574 = vadd.f32 %v430, %v573
  %v575 = vpop.f32.mrb[0].mxu0
  %v576 = vadd.f32 %v430, %v575
  %577 = vdwg.mxu0
  %v578 = vmax.f32 %v503, 0.0
  %v579 = vmax.f32 %v505, 0.0
  %v580 = vmax.f32 %v574, 0.0
  %v581 = vmax.f32 %v576, 0.0
  %582 = vrot.lane.b32.xlu0 %v578, 17
  %v583 = vpop.permute.xlu0 %582
  %584 = vrot.lane.b32.xlu0 %v579, 17
  %v585 = vpop.permute.xlu0 %584
  %586 = vrot.lane.b32.xlu0 %v580, 17
  %v587 = vpop.permute.xlu0 %586
  %588 = vrot.lane.b32.xlu0 %v581, 17
  %v589 = vpop.permute.xlu0 %588
  %v590 = vsel %vm42, %v587, %v589
  %v591 = vsel %vm42, %v585, %v587
  %v592 = vsel %vm42, %v583, %v585
  %v593 = vsel %vm42, %v589, %v583
  %v594 = vld [vmem:[%s5] sm:$0xf]
  %v596 = vlaneseq
  %v597 = vshrl.u32 %v596, 7
  %v598 = vsub.s32 0, %v597
  %v599 = vrot.slane %v594, %v598
  %v600 = vlaneseq
  %v601 = vshrl.u32 %v600, 7
  %v602 = vsub.s32 1, %v601
  %v603 = vrot.slane %v594, %v602
  %v604 = vlaneseq
  %v605 = vshrl.u32 %v604, 7
  %v606 = vsub.s32 2, %v605
  %v607 = vrot.slane %v594, %v606
  %v608 = vlaneseq
  %v609 = vshrl.u32 %v608, 7
  %v610 = vsub.s32 3, %v609
  %v611 = vrot.slane %v594, %v610
  %v616 = vmul.f32 %v593, %v599
  %v617 = vmul.f32 %v592, %v603
  %v618 = vmul.f32 %v591, %v607
  %v619 = vmul.f32 %v590, %v611
  %620 = vst [vmem:[#allocation3] sm:$0xff] %v616
  %621 = vst [vmem:[#allocation3 + $0x8] sm:$0xff] %v617
  %622 = vst [vmem:[#allocation3 + $0x10] sm:$0xff] %v618
  %623 = vst [vmem:[#allocation3 + $0x18] sm:$0xff] %v619
  %624 = vrot.lane.b32.xlu0 %v578, 16
  %v625 = vpop.permute.xlu0 %624
  %626 = vrot.lane.b32.xlu0 %v579, 16
  %v627 = vpop.permute.xlu0 %626
  %628 = vrot.lane.b32.xlu0 %v580, 16
  %v629 = vpop.permute.xlu0 %628
  %630 = vrot.lane.b32.xlu0 %v581, 16
  %v631 = vpop.permute.xlu0 %630
  %v632 = vsel %vm85, %v629, %v631
  %v633 = vsel %vm85, %v627, %v629
  %v634 = vsel %vm85, %v625, %v627
  %v635 = vsel %vm85, %v631, %v625
  %v636 = vld [vmem:[%s90] sm:$0xf]
  %v638 = vlaneseq
  %v639 = vshrl.u32 %v638, 7
  %v640 = vsub.s32 0, %v639
  %v641 = vrot.slane %v636, %v640
  %v642 = vlaneseq
  %v643 = vshrl.u32 %v642, 7
  %v644 = vsub.s32 1, %v643
  %v645 = vrot.slane %v636, %v644
  %v646 = vlaneseq
  %v647 = vshrl.u32 %v646, 7
  %v648 = vsub.s32 2, %v647
  %v649 = vrot.slane %v636, %v648
  %v650 = vlaneseq
  %v651 = vshrl.u32 %v650, 7
  %v652 = vsub.s32 3, %v651
  %v653 = vrot.slane %v636, %v652
  %v658 = vmul.f32 %v635, %v641
  %v659 = vmul.f32 %v634, %v645
  %v660 = vmul.f32 %v633, %v649
  %v661 = vmul.f32 %v632, %v653
  %662 = vst [vmem:[#allocation3 + $0x20] sm:$0xff] %v658
  %663 = vst [vmem:[#allocation3 + $0x28] sm:$0xff] %v659
  %664 = vst [vmem:[#allocation3 + $0x30] sm:$0xff] %v660
  %665 = vst [vmem:[#allocation3 + $0x38] sm:$0xff] %v661
  %666 = vrot.lane.b32.xlu0 %v578, 15
  %v667 = vpop.permute.xlu0 %666
  %668 = vrot.lane.b32.xlu0 %v579, 15
  %v669 = vpop.permute.xlu0 %668
  %670 = vrot.lane.b32.xlu0 %v580, 15
  %v671 = vpop.permute.xlu0 %670
  %672 = vrot.lane.b32.xlu0 %v581, 15
  %v673 = vpop.permute.xlu0 %672
  %v674 = vsel %vm129, %v671, %v673
  %v675 = vsel %vm129, %v669, %v671
  %v676 = vsel %vm129, %v667, %v669
  %v677 = vsel %vm129, %v673, %v667
  %v678 = vld [vmem:[%s134] sm:$0xf]
  %v680 = vlaneseq
  %v681 = vshrl.u32 %v680, 7
  %v682 = vsub.s32 0, %v681
  %v683 = vrot.slane %v678, %v682
  %v684 = vlaneseq
  %v685 = vshrl.u32 %v684, 7
  %v686 = vsub.s32 1, %v685
  %v687 = vrot.slane %v678, %v686
  %v688 = vlaneseq
  %v689 = vshrl.u32 %v688, 7
  %v690 = vsub.s32 2, %v689
  %v691 = vrot.slane %v678, %v690
  %v692 = vlaneseq
  %v693 = vshrl.u32 %v692, 7
  %v694 = vsub.s32 3, %v693
  %v695 = vrot.slane %v678, %v694
  %v700 = vmul.f32 %v677, %v683
  %v701 = vmul.f32 %v676, %v687
  %v702 = vmul.f32 %v675, %v691
  %v703 = vmul.f32 %v674, %v695
  %704 = vst [vmem:[#allocation3 + $0x40] sm:$0xff] %v700
  %705 = vst [vmem:[#allocation3 + $0x48] sm:$0xff] %v701
  %706 = vst [vmem:[#allocation3 + $0x50] sm:$0xff] %v702
  %707 = vst [vmem:[#allocation3 + $0x58] sm:$0xff] %v703
  %708 = vrot.lane.b32.xlu0 %v578, 1
  %v709 = vpop.permute.xlu0 %708
  %710 = vrot.lane.b32.xlu0 %v579, 1
  %v711 = vpop.permute.xlu0 %710
  %712 = vrot.lane.b32.xlu0 %v580, 1
  %v713 = vpop.permute.xlu0 %712
  %714 = vrot.lane.b32.xlu0 %v581, 1
  %v715 = vpop.permute.xlu0 %714
  %v716 = vsel %vm173, %v713, %v715
  %v717 = vsel %vm173, %v711, %v713
  %v718 = vsel %vm173, %v709, %v711
  %v719 = vsel %vm173, %v715, %v709
  %v720 = vld [vmem:[%s178] sm:$0xf]
  %v722 = vlaneseq
  %v723 = vshrl.u32 %v722, 7
  %v724 = vsub.s32 0, %v723
  %v725 = vrot.slane %v720, %v724
  %v726 = vlaneseq
  %v727 = vshrl.u32 %v726, 7
  %v728 = vsub.s32 1, %v727
  %v729 = vrot.slane %v720, %v728
  %v730 = vlaneseq
  %v731 = vshrl.u32 %v730, 7
  %v732 = vsub.s32 2, %v731
  %v733 = vrot.slane %v720, %v732
  %v734 = vlaneseq
  %v735 = vshrl.u32 %v734, 7
  %v736 = vsub.s32 3, %v735
  %v737 = vrot.slane %v720, %v736
  %v742 = vmul.f32 %v719, %v725
  %v743 = vmul.f32 %v718, %v729
  %v744 = vmul.f32 %v717, %v733
  %v745 = vmul.f32 %v716, %v737
  %746 = vst [vmem:[#allocation3 + $0x60] sm:$0xff] %v742
  %747 = vst [vmem:[#allocation3 + $0x68] sm:$0xff] %v743
  %748 = vst [vmem:[#allocation3 + $0x70] sm:$0xff] %v744
  %749 = vst [vmem:[#allocation3 + $0x78] sm:$0xff] %v745
  %750 = vst [vmem:[#allocation3 + $0x80] sm:$0xff] %v578
  %751 = vst [vmem:[#allocation3 + $0x88] sm:$0xff] %v579
  %752 = vst [vmem:[#allocation3 + $0x90] sm:$0xff] %v580
  %753 = vst [vmem:[#allocation3 + $0x98] sm:$0xff] %v581
  %754 = vrot.lane.b32.xlu0 %v578, 127
  %v755 = vpop.permute.xlu0 %754
  %756 = vrot.lane.b32.xlu0 %v579, 127
  %v757 = vpop.permute.xlu0 %756
  %758 = vrot.lane.b32.xlu0 %v580, 127
  %v759 = vpop.permute.xlu0 %758
  %760 = vrot.lane.b32.xlu0 %v581, 127
  %v761 = vpop.permute.xlu0 %760
  %v762 = vsel %vm221, %v759, %v761
  %v763 = vsel %vm221, %v757, %v759
  %v764 = vsel %vm221, %v755, %v757
  %v765 = vsel %vm221, %v761, %v755
  %v766 = vld [vmem:[%s226] sm:$0xf]
  %v768 = vlaneseq
  %v769 = vshrl.u32 %v768, 7
  %v770 = vsub.s32 0, %v769
  %v771 = vrot.slane %v766, %v770
  %v772 = vlaneseq
  %v773 = vshrl.u32 %v772, 7
  %v774 = vsub.s32 1, %v773
  %v775 = vrot.slane %v766, %v774
  %v776 = vlaneseq
  %v777 = vshrl.u32 %v776, 7
  %v778 = vsub.s32 2, %v777
  %v779 = vrot.slane %v766, %v778
  %v780 = vlaneseq
  %v781 = vshrl.u32 %v780, 7
  %v782 = vsub.s32 3, %v781
  %v783 = vrot.slane %v766, %v782
  %v788 = vmul.f32 %v764, %v771
  %v789 = vmul.f32 %v763, %v775
  %v790 = vmul.f32 %v762, %v779
  %v791 = vmul.f32 %v765, %v783
  %792 = vst [vmem:[#allocation3 + $0xa0] sm:$0xff] %v788
  %793 = vst [vmem:[#allocation3 + $0xa8] sm:$0xff] %v789
  %794 = vst [vmem:[#allocation3 + $0xb0] sm:$0xff] %v790
  %795 = vst [vmem:[#allocation3 + $0xb8] sm:$0xff] %v791
  %796 = vrot.lane.b32.xlu0 %v578, 113
  %v797 = vpop.permute.xlu0 %796
  %798 = vrot.lane.b32.xlu0 %v579, 113
  %v799 = vpop.permute.xlu0 %798
  %800 = vrot.lane.b32.xlu0 %v580, 113
  %v801 = vpop.permute.xlu0 %800
  %802 = vrot.lane.b32.xlu0 %v581, 113
  %v803 = vpop.permute.xlu0 %802
  %v804 = vsel %vm265, %v801, %v803
  %v805 = vsel %vm265, %v799, %v801
  %v806 = vsel %vm265, %v797, %v799
  %v807 = vsel %vm265, %v803, %v797
  %v808 = vld [vmem:[%s270] sm:$0xf]
  %v810 = vlaneseq
  %v811 = vshrl.u32 %v810, 7
  %v812 = vsub.s32 0, %v811
  %v813 = vrot.slane %v808, %v812
  %v814 = vlaneseq
  %v815 = vshrl.u32 %v814, 7
  %v816 = vsub.s32 1, %v815
  %v817 = vrot.slane %v808, %v816
  %v818 = vlaneseq
  %v819 = vshrl.u32 %v818, 7
  %v820 = vsub.s32 2, %v819
  %v821 = vrot.slane %v808, %v820
  %v822 = vlaneseq
  %v823 = vshrl.u32 %v822, 7
  %v824 = vsub.s32 3, %v823
  %v825 = vrot.slane %v808, %v824
  %v830 = vmul.f32 %v806, %v813
  %v831 = vmul.f32 %v805, %v817
  %v832 = vmul.f32 %v804, %v821
  %v833 = vmul.f32 %v807, %v825
  %834 = vst [vmem:[#allocation3 + $0xc0] sm:$0xff] %v830
  %835 = vst [vmem:[#allocation3 + $0xc8] sm:$0xff] %v831
  %836 = vst [vmem:[#allocation3 + $0xd0] sm:$0xff] %v832
  %837 = vst [vmem:[#allocation3 + $0xd8] sm:$0xff] %v833
  %838 = vrot.lane.b32.xlu0 %v578, 112
  %v839 = vpop.permute.xlu0 %838
  %840 = vrot.lane.b32.xlu0 %v579, 112
  %v841 = vpop.permute.xlu0 %840
  %842 = vrot.lane.b32.xlu0 %v580, 112
  %v843 = vpop.permute.xlu0 %842
  %844 = vrot.lane.b32.xlu0 %v581, 112
  %v845 = vpop.permute.xlu0 %844
  %v846 = vsel %vm309, %v843, %v845
  %v847 = vsel %vm309, %v841, %v843
  %v848 = vsel %vm309, %v839, %v841
  %v849 = vsel %vm309, %v845, %v839
  %v850 = vld [vmem:[%s314] sm:$0xf]
  %v852 = vlaneseq
  %v853 = vshrl.u32 %v852, 7
  %v854 = vsub.s32 0, %v853
  %v855 = vrot.slane %v850, %v854
  %v856 = vlaneseq
  %v857 = vshrl.u32 %v856, 7
  %v858 = vsub.s32 1, %v857
  %v859 = vrot.slane %v850, %v858
  %v860 = vlaneseq
  %v861 = vshrl.u32 %v860, 7
  %v862 = vsub.s32 2, %v861
  %v863 = vrot.slane %v850, %v862
  %v864 = vlaneseq
  %v865 = vshrl.u32 %v864, 7
  %v866 = vsub.s32 3, %v865
  %v867 = vrot.slane %v850, %v866
  %v872 = vmul.f32 %v848, %v855
  %v873 = vmul.f32 %v847, %v859
  %v874 = vmul.f32 %v846, %v863
  %v875 = vmul.f32 %v849, %v867
  %876 = vst [vmem:[#allocation3 + $0xe0] sm:$0xff] %v872
  %877 = vst [vmem:[#allocation3 + $0xe8] sm:$0xff] %v873
  %878 = vst [vmem:[#allocation3 + $0xf0] sm:$0xff] %v874
  %879 = vst [vmem:[#allocation3 + $0xf8] sm:$0xff] %v875
  %880 = vrot.lane.b32.xlu0 %v578, 111
  %v881 = vpop.permute.xlu0 %880
  %882 = vrot.lane.b32.xlu0 %v579, 111
  %v883 = vpop.permute.xlu0 %882
  %884 = vrot.lane.b32.xlu0 %v580, 111
  %v885 = vpop.permute.xlu0 %884
  %886 = vrot.lane.b32.xlu0 %v581, 111
  %v887 = vpop.permute.xlu0 %886
  %v888 = vsel %vm353, %v885, %v887
  %v889 = vsel %vm353, %v883, %v885
  %v890 = vsel %vm353, %v881, %v883
  %v891 = vsel %vm353, %v887, %v881
  %v892 = vld [vmem:[%s358] sm:$0xf]
  %v894 = vlaneseq
  %v895 = vshrl.u32 %v894, 7
  %v896 = vsub.s32 0, %v895
  %v897 = vrot.slane %v892, %v896
  %v898 = vlaneseq
  %v899 = vshrl.u32 %v898, 7
  %v900 = vsub.s32 1, %v899
  %v901 = vrot.slane %v892, %v900
  %v902 = vlaneseq
  %v903 = vshrl.u32 %v902, 7
  %v904 = vsub.s32 2, %v903
  %v905 = vrot.slane %v892, %v904
  %v906 = vlaneseq
  %v907 = vshrl.u32 %v906, 7
  %v908 = vsub.s32 3, %v907
  %v909 = vrot.slane %v892, %v908
  %v914 = vmul.f32 %v890, %v897
  %v915 = vmul.f32 %v889, %v901
  %v916 = vmul.f32 %v888, %v905
  %v917 = vmul.f32 %v891, %v909
  %918 = vst [vmem:[#allocation3 + $0x100] sm:$0xff] %v914
  %919 = vst [vmem:[#allocation3 + $0x108] sm:$0xff] %v915
  %920 = vst [vmem:[#allocation3 + $0x110] sm:$0xff] %v916
  %921 = vst [vmem:[#allocation3 + $0x118] sm:$0xff] %v917
  %v922 = vld [vmem:[%s3] sm:$0xff]
  %v923 = vld [vmem:[#allocation3] sm:$0xff]
  %v924 = vld [vmem:[#allocation3 + $0x8] sm:$0xff]
  %v925 = vld [vmem:[#allocation3 + $0x10] sm:$0xff]
  %v926 = vld [vmem:[#allocation3 + $0x18] sm:$0xff]
  %v927 = vld [vmem:[#allocation3 + $0x20] sm:$0xff]
  %v928 = vld [vmem:[#allocation3 + $0x28] sm:$0xff]
  %v929 = vld [vmem:[#allocation3 + $0x30] sm:$0xff]
  %v930 = vld [vmem:[#allocation3 + $0x38] sm:$0xff]
  %v931 = vld [vmem:[#allocation3 + $0x40] sm:$0xff]
  %v932 = vld [vmem:[#allocation3 + $0x48] sm:$0xff]
  %v933 = vld [vmem:[#allocation3 + $0x50] sm:$0xff]
  %v934 = vld [vmem:[#allocation3 + $0x58] sm:$0xff]
  %v935 = vld [vmem:[#allocation3 + $0x60] sm:$0xff]
  %v936 = vld [vmem:[#allocation3 + $0x68] sm:$0xff]
  %v937 = vld [vmem:[#allocation3 + $0x70] sm:$0xff]
  %v938 = vld [vmem:[#allocation3 + $0x78] sm:$0xff]
  %v939 = vld [vmem:[#allocation3 + $0x80] sm:$0xff]
  %v940 = vld [vmem:[#allocation3 + $0x88] sm:$0xff]
  %v941 = vld [vmem:[#allocation3 + $0x90] sm:$0xff]
  %v942 = vld [vmem:[#allocation3 + $0x98] sm:$0xff]
  %v943 = vld [vmem:[#allocation3 + $0xa0] sm:$0xff]
  %v944 = vld [vmem:[#allocation3 + $0xa8] sm:$0xff]
  %v945 = vld [vmem:[#allocation3 + $0xb0] sm:$0xff]
  %v946 = vld [vmem:[#allocation3 + $0xb8] sm:$0xff]
  %v947 = vld [vmem:[#allocation3 + $0xc0] sm:$0xff]
  %v948 = vld [vmem:[#allocation3 + $0xc8] sm:$0xff]
  %v949 = vld [vmem:[#allocation3 + $0xd0] sm:$0xff]
  %v950 = vld [vmem:[#allocation3 + $0xd8] sm:$0xff]
  %v951 = vld [vmem:[#allocation3 + $0xe0] sm:$0xff]
  %v952 = vld [vmem:[#allocation3 + $0xe8] sm:$0xff]
  %v953 = vld [vmem:[#allocation3 + $0xf0] sm:$0xff]
  %v954 = vld [vmem:[#allocation3 + $0xf8] sm:$0xff]
  %v955 = vld [vmem:[#allocation3 + $0x100] sm:$0xff]
  %v956 = vld [vmem:[#allocation3 + $0x108] sm:$0xff]
  %v957 = vld [vmem:[#allocation3 + $0x110] sm:$0xff]
  %v958 = vld [vmem:[#allocation3 + $0x118] sm:$0xff]
  %v959 = vld [vmem:[%s4] sm:$0xff]
  %961 = vset.pattern.permute.xlu0 0
  %962 = vperm.xlu0 %961, %v959
  %v963 = vpop.permute.xlu0 %962
  %v966 = vsel %vm432, %v922, 0
  %968 = vmatprep.subr.mxu0 %v924
  %969 = vmatpush1.msra.mxu0 %v923
  %970 = vmatprep.subr.mxu0 %v928
  %971 = vmatpush1.msra.mxu0 %v927
  %972 = vmatprep.subr.mxu0 %v932
  %973 = vmatpush1.msra.mxu0 %v931
  %974 = vmatprep.subr.mxu0 %v936
  %975 = vmatpush1.msra.mxu0 %v935
  %976 = vmatprep.subr.mxu0 %v940
  %977 = vmatpush1.msra.mxu0 %v939
  %978 = vmatprep.subr.mxu0 %v944
  %979 = vmatpush1.msra.mxu0 %v943
  %980 = vmatprep.subr.mxu0 %v948
  %981 = vmatpush1.msra.mxu0 %v947
  %982 = vmatprep.subr.mxu0 %v952
  %983 = vmatpush1.msra.mxu0 %v951
  %984 = vmatprep.subr.mxu0 %v956
  %985 = vmatpush1.msra.mxu0 %v955
  %986 = vmatprep.subr.mxu0 0.0
  %987 = vmatpush1.msra.mxu0 0.0
  %988 = vmatprep.subr.mxu0 0.0
  %989 = vmatpush1.msra.mxu0 0.0
  %990 = vmatprep.subr.mxu0 0.0
  %991 = vmatpush1.msra.mxu0 0.0
  %992 = vmatprep.subr.mxu0 0.0
  %993 = vmatpush1.msra.mxu0 0.0
  %994 = vmatprep.subr.mxu0 0.0
  %995 = vmatpush1.msra.mxu0 0.0
  %996 = vmatprep.subr.mxu0 0.0
  %997 = vmatpush1.msra.mxu0 0.0
  %998 = vmatprep.subr.mxu0 0.0
  %999 = vmatpush1.msra.mxu0 0.0
  %1000 = vmatprep.subr.mxu0 0.0
  %1001 = vmatpush1.msra.mxu0 0.0
  %1002 = vmatprep.subr.mxu0 0.0
  %1003 = vmatpush1.msra.mxu0 0.0
  %1004 = vmatprep.subr.mxu0 0.0
  %1005 = vmatpush1.msra.mxu0 0.0
  %1006 = vmatprep.subr.mxu0 0.0
  %1007 = vmatpush1.msra.mxu0 0.0
  %1008 = vmatprep.subr.mxu0 0.0
  %1009 = vmatpush1.msra.mxu0 0.0
  %1010 = vmatprep.subr.mxu0 0.0
  %1011 = vmatpush1.msra.mxu0 0.0
  %1012 = vmatprep.subr.mxu0 0.0
  %1013 = vmatpush1.msra.mxu0 0.0
  %1014 = vmatprep.subr.mxu0 0.0
  %1015 = vmatpush1.msra.mxu0 0.0
  %1016 = vmatprep.subr.mxu0 0.0
  %1017 = vmatpush1.msra.mxu0 0.0
  %1018 = vmatprep.subr.mxu0 0.0
  %1019 = vmatpush1.msra.mxu0 0.0
  %1020 = vmatprep.subr.mxu0 0.0
  %1021 = vmatpush1.msra.mxu0 0.0
  %1022 = vmatprep.subr.mxu0 0.0
  %1023 = vmatpush1.msra.mxu0 0.0
  %1024 = vmatprep.subr.mxu0 0.0
  %1025 = vmatpush1.msra.mxu0 0.0
  %1026 = vmatprep.subr.mxu0 0.0
  %1027 = vmatpush1.msra.mxu0 0.0
  %1028 = vmatprep.subr.mxu0 0.0
  %1029 = vmatpush1.msra.mxu0 0.0
  %1030 = vmatprep.subr.mxu0 0.0
  %1031 = vmatpush1.msra.mxu0 0.0
  %1032 = vmatprep.mubr.f32.mxu0 0.0
  %1033 = vmatmul.mubr.f32.gmra.mrb[0].mxu0 %v966
  %v1034 = vpop.f32.mrb[0].mxu0
  %v1035 = vadd.f32 %v963, %v1034
  %v1036 = vpop.f32.mrb[0].mxu0
  %v1037 = vadd.f32 %v963, %v1036
  %1038 = vdwg.mxu0
  %1039 = vmatprep.subr.mxu0 %v926
  %1040 = vmatpush1.msra.mxu0 %v925
  %1041 = vmatprep.subr.mxu0 %v930
  %1042 = vmatpush1.msra.mxu0 %v929
  %1043 = vmatprep.subr.mxu0 %v934
  %1044 = vmatpush1.msra.mxu0 %v933
  %1045 = vmatprep.subr.mxu0 %v938
  %1046 = vmatpush1.msra.mxu0 %v937
  %1047 = vmatprep.subr.mxu0 %v942
  %1048 = vmatpush1.msra.mxu0 %v941
  %1049 = vmatprep.subr.mxu0 %v946
  %1050 = vmatpush1.msra.mxu0 %v945
  %1051 = vmatprep.subr.mxu0 %v950
  %1052 = vmatpush1.msra.mxu0 %v949
  %1053 = vmatprep.subr.mxu0 %v954
  %1054 = vmatpush1.msra.mxu0 %v953
  %1055 = vmatprep.subr.mxu0 %v958
  %1056 = vmatpush1.msra.mxu0 %v957
  %1057 = vmatprep.subr.mxu0 0.0
  %1058 = vmatpush1.msra.mxu0 0.0
  %1059 = vmatprep.subr.mxu0 0.0
  %1060 = vmatpush1.msra.mxu0 0.0
  %1061 = vmatprep.subr.mxu0 0.0
  %1062 = vmatpush1.msra.mxu0 0.0
  %1063 = vmatprep.subr.mxu0 0.0
  %1064 = vmatpush1.msra.mxu0 0.0
  %1065 = vmatprep.subr.mxu0 0.0
  %1066 = vmatpush1.msra.mxu0 0.0
  %1067 = vmatprep.subr.mxu0 0.0
  %1068 = vmatpush1.msra.mxu0 0.0
  %1069 = vmatprep.subr.mxu0 0.0
  %1070 = vmatpush1.msra.mxu0 0.0
  %1071 = vmatprep.subr.mxu0 0.0
  %1072 = vmatpush1.msra.mxu0 0.0
  %1073 = vmatprep.subr.mxu0 0.0
  %1074 = vmatpush1.msra.mxu0 0.0
  %1075 = vmatprep.subr.mxu0 0.0
  %1076 = vmatpush1.msra.mxu0 0.0
  %1077 = vmatprep.subr.mxu0 0.0
  %1078 = vmatpush1.msra.mxu0 0.0
  %1079 = vmatprep.subr.mxu0 0.0
  %1080 = vmatpush1.msra.mxu0 0.0
  %1081 = vmatprep.subr.mxu0 0.0
  %1082 = vmatpush1.msra.mxu0 0.0
  %1083 = vmatprep.subr.mxu0 0.0
  %1084 = vmatpush1.msra.mxu0 0.0
  %1085 = vmatprep.subr.mxu0 0.0
  %1086 = vmatpush1.msra.mxu0 0.0
  %1087 = vmatprep.subr.mxu0 0.0
  %1088 = vmatpush1.msra.mxu0 0.0
  %1089 = vmatprep.subr.mxu0 0.0
  %1090 = vmatpush1.msra.mxu0 0.0
  %1091 = vmatprep.subr.mxu0 0.0
  %1092 = vmatpush1.msra.mxu0 0.0
  %1093 = vmatprep.subr.mxu0 0.0
  %1094 = vmatpush1.msra.mxu0 0.0
  %1095 = vmatprep.subr.mxu0 0.0
  %1096 = vmatpush1.msra.mxu0 0.0
  %1097 = vmatprep.subr.mxu0 0.0
  %1098 = vmatpush1.msra.mxu0 0.0
  %1099 = vmatprep.subr.mxu0 0.0
  %1100 = vmatpush1.msra.mxu0 0.0
  %1101 = vmatprep.subr.mxu0 0.0
  %1102 = vmatpush1.msra.mxu0 0.0
  %1103 = vmatprep.mubr.f32.mxu0 0.0
  %1104 = vmatmul.mubr.f32.gmra.mrb[0].mxu0 %v966
  %v1105 = vpop.f32.mrb[0].mxu0
  %v1106 = vadd.f32 %v963, %v1105
  %v1107 = vpop.f32.mrb[0].mxu0
  %v1108 = vadd.f32 %v963, %v1107
  %1109 = vdwg.mxu0
  %v1110 = vmax.f32 %v1035, 0.0
  %v1111 = vmax.f32 %v1037, 0.0
  %v1112 = vmax.f32 %v1106, 0.0
  %v1113 = vmax.f32 %v1108, 0.0
  %1114 = vst [vmem:[%s7] sm:$0xff] %v1110
  %1115 = vst [vmem:[%s7 + $0x8] sm:$0xff] %v1111
  %1116 = vst [vmem:[%s7 + $0x10] sm:$0xff] %v1112
  %1117 = vst [vmem:[%s7 + $0x18] sm:$0xff] %v1113
  %1118 = vrot.lane.b32.xlu0 %v1110, 127
  %v1119 = vpop.permute.xlu0 %1118
  %1120 = vrot.lane.b32.xlu0 %v1111, 127
  %v1121 = vpop.permute.xlu0 %1120
  %1122 = vrot.lane.b32.xlu0 %v1112, 127
  %v1123 = vpop.permute.xlu0 %1122
  %1124 = vrot.lane.b32.xlu0 %v1113, 127
  %v1125 = vpop.permute.xlu0 %1124
  %v1126 = vsel %vm221, %v1123, %v1125
  %v1127 = vsel %vm221, %v1121, %v1123
  %v1128 = vsel %vm221, %v1119, %v1121
  %v1129 = vsel %vm221, %v1125, %v1119
  %v1130 = vmax.f32 %v1110, %v1128
  %v1131 = vmax.f32 %v1111, %v1127
  %v1132 = vmax.f32 %v1112, %v1126
  %v1133 = vmax.f32 %v1113, %v1129
  %1134 = vrot.lane.b32.xlu0 %v1130, 112
  %v1135 = vpop.permute.xlu0 %1134
  %1136 = vrot.lane.b32.xlu0 %v1131, 112
  %v1137 = vpop.permute.xlu0 %1136
  %1138 = vrot.lane.b32.xlu0 %v1132, 112
  %v1139 = vpop.permute.xlu0 %1138
  %1140 = vrot.lane.b32.xlu0 %v1133, 112
  %v1141 = vpop.permute.xlu0 %1140
  %v1142 = vsel %vm309, %v1139, %v1141
  %v1143 = vsel %vm309, %v1137, %v1139
  %v1144 = vsel %vm309, %v1135, %v1137
  %v1145 = vsel %vm309, %v1141, %v1135
  %v1146 = vmax.f32 %v1130, %v1144
  %v1147 = vmax.f32 %v1131, %v1143
  %v1148 = vmax.f32 %v1132, %v1142
  %v1149 = vmax.f32 %v1133, %v1145
  %v1150 = vld [vmem:[%s6] sm:$0xff]
  %v1151 = vld [vmem:[%s6 + $0x8] sm:$0xff]
  %v1152 = vld [vmem:[%s6 + $0x10] sm:$0xff]
  %v1153 = vld [vmem:[%s6 + $0x18] sm:$0xff]
  %v1154 = vld [vmem:[%s6 + $0x20] sm:$0xff]
  %v1155 = vld [vmem:[%s6 + $0x28] sm:$0xff]
  %v1156 = vld [vmem:[%s6 + $0x30] sm:$0xff]
  %v1157 = vld [vmem:[%s6 + $0x38] sm:$0xff]
  %v1158 = vld [vmem:[%s6 + $0x40] sm:$0xff]
  %v1159 = vld [vmem:[%s6 + $0x48] sm:$0xff]
  %v1160 = vld [vmem:[%s6 + $0x50] sm:$0xff]
  %v1161 = vld [vmem:[%s6 + $0x58] sm:$0xff]
  %v1162 = vld [vmem:[%s6 + $0x60] sm:$0xff]
  %v1163 = vld [vmem:[%s6 + $0x68] sm:$0xff]
  %v1164 = vld [vmem:[%s6 + $0x70] sm:$0xff]
  %v1165 = vld [vmem:[%s6 + $0x78] sm:$0xff]
  %v1166 = vld [vmem:[%s6 + $0x80] sm:$0xff]
  %v1167 = vld [vmem:[%s6 + $0x88] sm:$0xff]
  %v1168 = vld [vmem:[%s6 + $0x90] sm:$0xff]
  %v1169 = vld [vmem:[%s6 + $0x98] sm:$0xff]
  %v1170 = vld [vmem:[%s6 + $0xa0] sm:$0xff]
  %v1171 = vld [vmem:[%s6 + $0xa8] sm:$0xff]
  %v1172 = vld [vmem:[%s6 + $0xb0] sm:$0xff]
  %v1173 = vld [vmem:[%s6 + $0xb8] sm:$0xff]
  %v1174 = vld [vmem:[%s6 + $0xc0] sm:$0xff]
  %v1175 = vld [vmem:[%s6 + $0xc8] sm:$0xff]
  %v1176 = vld [vmem:[%s6 + $0xd0] sm:$0xff]
  %v1177 = vld [vmem:[%s6 + $0xd8] sm:$0xff]
  %v1178 = vld [vmem:[%s6 + $0xe0] sm:$0xff]
  %v1179 = vld [vmem:[%s6 + $0xe8] sm:$0xff]
  %v1180 = vld [vmem:[%s6 + $0xf0] sm:$0xff]
  %v1181 = vld [vmem:[%s6 + $0xf8] sm:$0xff]
  %v1182 = vld [vmem:[%s6 + $0x100] sm:$0xff]
  %v1183 = vld [vmem:[%s6 + $0x108] sm:$0xff]
  %v1184 = vld [vmem:[%s6 + $0x110] sm:$0xff]
  %v1185 = vld [vmem:[%s6 + $0x118] sm:$0xff]
  %v1186 = vld [vmem:[%s6 + $0x120] sm:$0xff]
  %v1187 = vld [vmem:[%s6 + $0x128] sm:$0xff]
  %v1188 = vld [vmem:[%s6 + $0x130] sm:$0xff]
  %v1189 = vld [vmem:[%s6 + $0x138] sm:$0xff]
  %v1190 = vld [vmem:[%s6 + $0x140] sm:$0xff]
  %v1191 = vld [vmem:[%s6 + $0x148] sm:$0xff]
  %v1192 = vld [vmem:[%s6 + $0x150] sm:$0xff]
  %v1193 = vld [vmem:[%s6 + $0x158] sm:$0xff]
  %v1194 = vld [vmem:[%s6 + $0x160] sm:$0xff]
  %v1195 = vld [vmem:[%s6 + $0x168] sm:$0xff]
  %v1196 = vld [vmem:[%s6 + $0x170] sm:$0xff]
  %v1197 = vld [vmem:[%s6 + $0x178] sm:$0xff]
  %v1198 = vld [vmem:[%s6 + $0x180] sm:$0xff]
  %v1199 = vld [vmem:[%s6 + $0x188] sm:$0xff]
  %v1200 = vld [vmem:[%s6 + $0x190] sm:$0xff]
  %v1201 = vld [vmem:[%s6 + $0x198] sm:$0xff]
  %v1202 = vld [vmem:[%s6 + $0x1a0] sm:$0xff]
  %v1203 = vld [vmem:[%s6 + $0x1a8] sm:$0xff]
  %v1204 = vld [vmem:[%s6 + $0x1b0] sm:$0xff]
  %v1205 = vld [vmem:[%s6 + $0x1b8] sm:$0xff]
  %v1206 = vld [vmem:[%s6 + $0x1c0] sm:$0xff]
  %v1207 = vld [vmem:[%s6 + $0x1c8] sm:$0xff]
  %v1208 = vld [vmem:[%s6 + $0x1d0] sm:$0xff]
  %v1209 = vld [vmem:[%s6 + $0x1d8] sm:$0xff]
  %v1210 = vld [vmem:[%s6 + $0x1e0] sm:$0xff]
  %v1211 = vld [vmem:[%s6 + $0x1e8] sm:$0xff]
  %v1212 = vld [vmem:[%s6 + $0x1f0] sm:$0xff]
  %v1213 = vld [vmem:[%s6 + $0x1f8] sm:$0xff]
  %1214 = vmatprep.subr.mxu0 0.0
  %1215 = vmatpush1.msra.mxu0 %v1150
  %1216 = vmatprep.subr.mxu0 0.0
  %1217 = vmatpush1.msra.mxu0 %v1151
  %1218 = vmatprep.subr.mxu0 0.0
  %1219 = vmatpush1.msra.mxu0 %v1152
  %1220 = vmatprep.subr.mxu0 0.0
  %1221 = vmatpush1.msra.mxu0 %v1153
  %1222 = vmatprep.subr.mxu0 0.0
  %1223 = vmatpush1.msra.mxu0 %v1154
  %1224 = vmatprep.subr.mxu0 0.0
  %1225 = vmatpush1.msra.mxu0 %v1155
  %1226 = vmatprep.subr.mxu0 0.0
  %1227 = vmatpush1.msra.mxu0 %v1156
  %1228 = vmatprep.subr.mxu0 0.0
  %1229 = vmatpush1.msra.mxu0 %v1157
  %1230 = vmatprep.subr.mxu0 0.0
  %1231 = vmatpush1.msra.mxu0 %v1158
  %1232 = vmatprep.subr.mxu0 0.0
  %1233 = vmatpush1.msra.mxu0 %v1159
  %1234 = vmatprep.subr.mxu0 0.0
  %1235 = vmatpush1.msra.mxu0 %v1160
  %1236 = vmatprep.subr.mxu0 0.0
  %1237 = vmatpush1.msra.mxu0 %v1161
  %1238 = vmatprep.subr.mxu0 0.0
  %1239 = vmatpush1.msra.mxu0 %v1162
  %1240 = vmatprep.subr.mxu0 0.0
  %1241 = vmatpush1.msra.mxu0 %v1163
  %1242 = vmatprep.subr.mxu0 0.0
  %1243 = vmatpush1.msra.mxu0 %v1164
  %1244 = vmatprep.subr.mxu0 0.0
  %1245 = vmatpush1.msra.mxu0 %v1165
  %1246 = vmatprep.subr.mxu0 0.0
  %1247 = vmatpush1.msra.mxu0 %v1166
  %1248 = vmatprep.subr.mxu0 0.0
  %1249 = vmatpush1.msra.mxu0 %v1167
  %1250 = vmatprep.subr.mxu0 0.0
  %1251 = vmatpush1.msra.mxu0 %v1168
  %1252 = vmatprep.subr.mxu0 0.0
  %1253 = vmatpush1.msra.mxu0 %v1169
  %1254 = vmatprep.subr.mxu0 0.0
  %1255 = vmatpush1.msra.mxu0 %v1170
  %1256 = vmatprep.subr.mxu0 0.0
  %1257 = vmatpush1.msra.mxu0 %v1171
  %1258 = vmatprep.subr.mxu0 0.0
  %1259 = vmatpush1.msra.mxu0 %v1172
  %1260 = vmatprep.subr.mxu0 0.0
  %1261 = vmatpush1.msra.mxu0 %v1173
  %1262 = vmatprep.subr.mxu0 0.0
  %1263 = vmatpush1.msra.mxu0 %v1174
  %1264 = vmatprep.subr.mxu0 0.0
  %1265 = vmatpush1.msra.mxu0 %v1175
  %1266 = vmatprep.subr.mxu0 0.0
  %1267 = vmatpush1.msra.mxu0 %v1176
  %1268 = vmatprep.subr.mxu0 0.0
  %1269 = vmatpush1.msra.mxu0 %v1177
  %1270 = vmatprep.subr.mxu0 0.0
  %1271 = vmatpush1.msra.mxu0 %v1178
  %1272 = vmatprep.subr.mxu0 0.0
  %1273 = vmatpush1.msra.mxu0 %v1179
  %1274 = vmatprep.subr.mxu0 0.0
  %1275 = vmatpush1.msra.mxu0 %v1180
  %1276 = vmatprep.subr.mxu0 0.0
  %1277 = vmatpush1.msra.mxu0 %v1181
  %1278 = vmatprep.mubr.f32.mxu0 %v1147
  %1279 = vmatmul.mubr.f32.gmra.mrb[0].mxu0 %v1146
  %v1280 = vpop.f32.mrb[0].mxu0
  %v1281 = vadd.f32 0.0, %v1280
  %v1282 = vpop.f32.mrb[0].mxu0
  %1283 = vdwg.mxu0
  %1284 = vmatprep.subr.mxu0 0.0
  %1285 = vmatpush1.msra.mxu0 %v1182
  %1286 = vmatprep.subr.mxu0 0.0
  %1287 = vmatpush1.msra.mxu0 %v1183
  %1288 = vmatprep.subr.mxu0 0.0
  %1289 = vmatpush1.msra.mxu0 %v1184
  %1290 = vmatprep.subr.mxu0 0.0
  %1291 = vmatpush1.msra.mxu0 %v1185
  %1292 = vmatprep.subr.mxu0 0.0
  %1293 = vmatpush1.msra.mxu0 %v1186
  %1294 = vmatprep.subr.mxu0 0.0
  %1295 = vmatpush1.msra.mxu0 %v1187
  %1296 = vmatprep.subr.mxu0 0.0
  %1297 = vmatpush1.msra.mxu0 %v1188
  %1298 = vmatprep.subr.mxu0 0.0
  %1299 = vmatpush1.msra.mxu0 %v1189
  %1300 = vmatprep.subr.mxu0 0.0
  %1301 = vmatpush1.msra.mxu0 %v1190
  %1302 = vmatprep.subr.mxu0 0.0
  %1303 = vmatpush1.msra.mxu0 %v1191
  %1304 = vmatprep.subr.mxu0 0.0
  %1305 = vmatpush1.msra.mxu0 %v1192
  %1306 = vmatprep.subr.mxu0 0.0
  %1307 = vmatpush1.msra.mxu0 %v1193
  %1308 = vmatprep.subr.mxu0 0.0
  %1309 = vmatpush1.msra.mxu0 %v1194
  %1310 = vmatprep.subr.mxu0 0.0
  %1311 = vmatpush1.msra.mxu0 %v1195
  %1312 = vmatprep.subr.mxu0 0.0
  %1313 = vmatpush1.msra.mxu0 %v1196
  %1314 = vmatprep.subr.mxu0 0.0
  %1315 = vmatpush1.msra.mxu0 %v1197
  %1316 = vmatprep.subr.mxu0 0.0
  %1317 = vmatpush1.msra.mxu0 %v1198
  %1318 = vmatprep.subr.mxu0 0.0
  %1319 = vmatpush1.msra.mxu0 %v1199
  %1320 = vmatprep.subr.mxu0 0.0
  %1321 = vmatpush1.msra.mxu0 %v1200
  %1322 = vmatprep.subr.mxu0 0.0
  %1323 = vmatpush1.msra.mxu0 %v1201
  %1324 = vmatprep.subr.mxu0 0.0
  %1325 = vmatpush1.msra.mxu0 %v1202
  %1326 = vmatprep.subr.mxu0 0.0
  %1327 = vmatpush1.msra.mxu0 %v1203
  %1328 = vmatprep.subr.mxu0 0.0
  %1329 = vmatpush1.msra.mxu0 %v1204
  %1330 = vmatprep.subr.mxu0 0.0
  %1331 = vmatpush1.msra.mxu0 %v1205
  %1332 = vmatprep.subr.mxu0 0.0
  %1333 = vmatpush1.msra.mxu0 %v1206
  %1334 = vmatprep.subr.mxu0 0.0
  %1335 = vmatpush1.msra.mxu0 %v1207
  %1336 = vmatprep.subr.mxu0 0.0
  %1337 = vmatpush1.msra.mxu0 %v1208
  %1338 = vmatprep.subr.mxu0 0.0
  %1339 = vmatpush1.msra.mxu0 %v1209
  %1340 = vmatprep.subr.mxu0 0.0
  %1341 = vmatpush1.msra.mxu0 %v1210
  %1342 = vmatprep.subr.mxu0 0.0
  %1343 = vmatpush1.msra.mxu0 %v1211
  %1344 = vmatprep.subr.mxu0 0.0
  %1345 = vmatpush1.msra.mxu0 %v1212
  %1346 = vmatprep.subr.mxu0 0.0
  %1347 = vmatpush1.msra.mxu0 %v1213
  %1348 = vmatprep.mubr.f32.mxu0 %v1149
  %1349 = vmatmul.mubr.f32.gmra.mrb[0].mxu0 %v1148
  %v1350 = vpop.f32.mrb[0].mxu0
  %v1351 = vadd.f32 %v1281, %v1350
  %v1352 = vpop.f32.mrb[0].mxu0
  %1353 = vdwg.mxu0
  %1354 = vst [vmem:[%s8] sm:$0xff] %v1351
  // Predicated region
  $region30: #{_lambda_.1} parent=0 // pred_check
    _
  $region31: #{_lambda_.1} parent=0 // pred_check_branch
    %1356 = sbr.rel (0) target = $region33
  $region32: #{_lambda_.1} parent=0 // pred_region
    _
  $region33: #{_lambda_.1} parent=0 // pred_fallthru
    _
  // Predicated region
  $region34: #{_lambda_.1} parent=0 // pred_check
    _
  $region35: #{_lambda_.1} parent=0 // pred_check_branch
    %1358 = sbr.rel (0) target = $region37
  $region36: #{_lambda_.1} parent=0 // pred_region
    _
  $region37: #{_lambda_.1} parent=0 // pred_fallthru
    _
  // Predicated region
  $region38: #{_lambda_.1} parent=0 // pred_check
    _
  $region39: #{_lambda_.1} parent=0 // pred_check_branch
    %1360 = sbr.rel (0) target = $region41
  $region40: #{_lambda_.1} parent=0 // pred_region
    _
  $region41: #{_lambda_.1} parent=0 // pred_fallthru
    _
  // Predicated region
  $region42: #{_lambda_.1} parent=0 // pred_check
    _
  $region43: #{_lambda_.1} parent=0 // pred_check_branch
    %1362 = sbr.rel (0) target = $region45
  $region44: #{_lambda_.1} parent=0 // pred_region
    _
  $region45: #{_lambda_.1} parent=0 // pred_fallthru
    _

</llo_original>
